<compile_context>
chip_gen: v7x
topology: tpu7x:2x2x1
jax: 0.10.0
libtpu: 0.0.40
codegen_flags: <defaults>
</compile_context>

<pallas_src>
import functools
import math

import jax
import jax.numpy as jnp
from jax.experimental import pallas as pl
from jax.experimental.pallas import tpu as pltpu


def gat_kernel(x_ref, wcat_ref, s_ref, bias_ref, hb_ref, out_ref, *,
               att_head, out_dim, leaky_alpha, matmul_dtype):
    Bt, N, D = x_ref.shape
    A, Dh = att_head, out_dim

    x = x_ref[...]                                    # (Bt, N, D) float32
    xf = x.reshape(Bt * N, D)

    def mm(a, b_):
        if matmul_dtype is not None:                  # optional bf16 MXU operands (v6e/v7x)
            a = a.astype(matmul_dtype)
            b_ = b_.astype(matmul_dtype)
        return jnp.dot(a, b_, preferred_element_type=jnp.float32)

    # Fused projection (all heads, head-major columns) + gate pre-activation: one MXU pass.
    hg = mm(xf, wcat_ref[...])                        # (Bt*N, 2D)
    h_all = hg[:, :D]                                 # (Bt*N, D)
    gate = jax.nn.sigmoid(hg[:, D:] + hb_ref[...])    # (Bt*N, D)

    # Per-head src/dst attention coefficients via one block-diagonal matmul.
    asd = mm(jnp.tanh(h_all), s_ref[...])             # (Bt*N, 2A): [src_0..src_{A-1}, dst_0..dst_{A-1}]

    h_b = h_all.reshape(Bt, N, D)
    asd_b = asd.reshape(Bt, N, 2 * A)
    gate_b = gate.reshape(Bt, N, D)

    for bi in range(Bt):                              # Bt is small & static -> unrolled
        asd_t = jnp.transpose(asd_b[bi])              # (2A, N): one transpose per batch element
        head_outs = []
        for a in range(A):                            # A is small & static -> unrolled
            a_src = asd_b[bi, :, a:a + 1]             # (N, 1)
            a_dst = asd_t[A + a:A + a + 1, :]         # (1, N)
            logits = a_src + a_dst                    # (N, N): src_i + dst_j
            logits = jnp.where(logits > 0, logits, leaky_alpha * logits)   # LeakyReLU
            # softmax over last dim (adj=None path -> no mask), denominator folded below
            m = jnp.max(logits, axis=-1, keepdims=True)
            e = jnp.exp(logits - m)
            s = jnp.sum(e, axis=-1, keepdims=True)
            h_a = h_b[bi, :, a * Dh:(a + 1) * Dh]     # (N, Dh)
            num = mm(e, h_a)                          # (N, Dh)
            head_outs.append(num * pl.reciprocal(s, approx=True))
        # transpose(1,2).view(batch, N, -1) == head-major concat along the feature axis
        feat = jnp.concatenate(head_outs, axis=-1) + bias_ref[...]          # (N, D)
        # ELU (alpha=1); exp only fed non-positive values (no inf on the dead branch)
        feat = jnp.where(feat > 0, feat, jnp.exp(jnp.minimum(feat, 0.0)) - 1.0)
        g = gate_b[bi]
        out = g * feat + (1.0 - g) * x[bi]
        # TODO(synk): F.dropout is identity in eval mode; training-mode dropout not implemented.
        out_ref[bi] = out.astype(out_ref.dtype)


def _largest_batch_tile(batch, max_tile=8):
    bt = min(batch, max_tile)
    while batch % bt != 0:
        bt -= 1
    return bt


def graph_attention_layer(feat_in, W, b, w_src, w_dst, H_weight, H_bias, *,
                          leaky_alpha=0.2, batch_tile=None, matmul_dtype=None):
    """feat_in: (batch, N, in_dim); W: (A, in_dim, out_dim); b: (out_dim,);
    w_src/w_dst: (A, out_dim, 1); H_weight: (in_dim, in_dim) torch-Linear layout;
    H_bias: (in_dim,).

    matmul_dtype=jnp.bfloat16 gives higher MXU throughput on v6e/v7x (f32 accumulation
    is kept either way); keep the default (None -> f32 operands) on v5e / for exactness.
    """
    batch, N, D = feat_in.shape
    A, _, Dh = W.shape
    assert D == A * Dh

    f32 = jnp.float32
    # Head-major fused projection matrix: columns [a*Dh:(a+1)*Dh] == W[a].
    W_all = jnp.transpose(W, (1, 0, 2)).reshape(D, A * Dh).astype(f32)
    Hw_t = H_weight.T.astype(f32)                     # x @ Hw_t == torch Linear x @ W^T
    W_cat = jnp.concatenate([W_all, Hw_t], axis=1)    # (D, 2D): projection + gate fused RHS

    # Block-diagonal src/dst score matrix (D, 2A): replaces 2A cross-lane reductions.
    S = jnp.zeros((D, 2 * A), f32)
    for a in range(A):
        S = S.at[a * Dh:(a + 1) * Dh, a].set(w_src[a, :, 0].astype(f32))
        S = S.at[a * Dh:(a + 1) * Dh, A + a].set(w_dst[a, :, 0].astype(f32))

    bias_tiled = jnp.tile(b.astype(f32), A).reshape(1, D)   # same (out_dim,) bias per head
    Hb2 = H_bias.astype(f32).reshape(1, D)

    Bt = batch_tile if batch_tile is not None else _largest_batch_tile(batch)
    assert batch % Bt == 0

    kernel = functools.partial(gat_kernel, att_head=A, out_dim=Dh,
                               leaky_alpha=leaky_alpha, matmul_dtype=matmul_dtype)
    # TODO(synk): output last dim (D=32 here) < 128 lanes -> masked stores; pad/slice in the
    # wrapper only when D permits a lane-dense (multiple-of-128) layout.
    return pl.pallas_call(
        kernel,
        out_shape=jax.ShapeDtypeStruct((batch, N, D), feat_in.dtype),
        grid=(batch // Bt,),
        in_specs=[
            pl.BlockSpec((Bt, N, D), lambda i: (i, 0, 0)),
            pl.BlockSpec((D, 2 * D), lambda i: (0, 0)),
            pl.BlockSpec((D, 2 * A), lambda i: (0, 0)),
            pl.BlockSpec((1, D), lambda i: (0, 0)),
            pl.BlockSpec((1, D), lambda i: (0, 0)),
        ],
        out_specs=pl.BlockSpec((Bt, N, D), lambda i: (i, 0, 0)),
        compiler_params=pltpu.CompilerParams(dimension_semantics=("parallel",)),
    )(feat_in, W_cat, S, bias_tiled, Hb2)


def gat_reference(x, W, b, w_src, w_dst, Hw, Hb, leaky_alpha=0.2):
    """Pure-JAX reference mirroring the PyTorch forward (eval mode, adj=None)."""
    h = jnp.einsum('bnd,adh->banh', x, W)
    th = jnp.tanh(h)
    a_src = jnp.einsum('banh,ah->ban', th, w_src[..., 0])[..., None]
    a_dst = jnp.einsum('banh,ah->ban', th, w_dst[..., 0])[..., None]
    attn = a_src + jnp.swapaxes(a_dst, -1, -2)
    attn = jnp.where(attn > 0, attn, leaky_alpha * attn)
    attn = jax.nn.softmax(attn, axis=-1)
    fo = jnp.einsum('banm,bamh->banh', attn, h) + b
    B, A, N, Dh = fo.shape
    fo = jnp.transpose(fo, (0, 2, 1, 3)).reshape(B, N, A * Dh)
    fo = jnp.where(fo > 0, fo, jnp.exp(jnp.minimum(fo, 0.0)) - 1.0)
    gate = jax.nn.sigmoid(x @ Hw.T + Hb)
    return gate * fo + (1.0 - gate) * x


if __name__ == "__main__":
    batch, N, in_dim, att_head = 2, 8, 32, 4
    out_dim = in_dim // att_head

    key = jax.random.PRNGKey(0)
    k_x, k_W, k_src, k_dst, k_Hw, k_Hb = jax.random.split(key, 6)

    feat_in = jax.random.normal(k_x, (batch, N, in_dim), dtype=jnp.float32)

    # Deterministic parameter init (xavier-style, mirrors shapes from __init__).
    bW = math.sqrt(6.0 / (in_dim * out_dim + att_head * out_dim))
    W = jax.random.uniform(k_W, (att_head, in_dim, out_dim), jnp.float32, -bW, bW)
    b = jnp.zeros((out_dim,), jnp.float32)
    bw = math.sqrt(6.0 / (out_dim + att_head))
    w_src = jax.random.uniform(k_src, (att_head, out_dim, 1), jnp.float32, -bw, bw)
    w_dst = jax.random.uniform(k_dst, (att_head, out_dim, 1), jnp.float32, -bw, bw)
    H_weight = jax.random.normal(k_Hw, (in_dim, in_dim), jnp.float32) * math.sqrt(2.0 / (2 * in_dim))
    H_bias = jax.random.uniform(k_Hb, (in_dim,), jnp.float32,
                                -1.0 / math.sqrt(in_dim), 1.0 / math.sqrt(in_dim))

    out = graph_attention_layer(feat_in, W, b, w_src, w_dst, H_weight, H_bias,
                                leaky_alpha=0.2)
    out = jax.block_until_ready(out)

    ref = gat_reference(feat_in, W, b, w_src, w_dst, H_weight, H_bias, leaky_alpha=0.2)
    assert out.shape == (batch, N, in_dim)
    assert jnp.allclose(out, ref, atol=1e-2, rtol=1e-2), "mismatch vs pure-JAX reference"

    print("KERNEL_OK")
</pallas_src>

<mosaic_0001>
module attributes {stable_mosaic.version = 11 : i64} {
  func.func @gat_kernel(%arg0: i32, %arg1: memref<2x8x32xf32, #tpu.memory_space<vmem>>, %arg2: memref<32x64xf32, #tpu.memory_space<vmem>>, %arg3: memref<32x8xf32, #tpu.memory_space<vmem>>, %arg4: memref<1x32xf32, #tpu.memory_space<vmem>>, %arg5: memref<1x32xf32, #tpu.memory_space<vmem>>, %arg6: memref<2x8x32xf32, #tpu.memory_space<vmem>>) attributes {dimension_semantics = [#tpu.dimension_semantics<parallel>], iteration_bounds = array<i64: 1>, scalar_prefetch = 0 : i64, scratch_operands = 0 : i64, tpu.core_type = #tpu.core_type<tc>, window_params = [{transform_indices = @transform_0, window_bounds = array<i64: 2, 8, 32>}, {pipeline_mode = #tpu.pipeline_mode<synchronous>, transform_indices = @transform_1, window_bounds = array<i64: 32, 64>}, {pipeline_mode = #tpu.pipeline_mode<synchronous>, transform_indices = @transform_2, window_bounds = array<i64: 32, 8>}, {pipeline_mode = #tpu.pipeline_mode<synchronous>, transform_indices = @transform_3, window_bounds = array<i64: 1, 32>}, {pipeline_mode = #tpu.pipeline_mode<synchronous>, transform_indices = @transform_4, window_bounds = array<i64: 1, 32>}, {transform_indices = @transform_5, window_bounds = array<i64: 2, 8, 32>}]} {
    %c0 = arith.constant 0 : index
    %c0_0 = arith.constant 0 : index
    %c0_1 = arith.constant 0 : index
    %0 = vector.load %arg1[%c0, %c0_0, %c0_1] : memref<2x8x32xf32, #tpu.memory_space<vmem>>, vector<2x8x32xf32>
    %1 = vector.shape_cast %0 : vector<2x8x32xf32> to vector<16x32xf32>
    %c0_2 = arith.constant 0 : index
    %c0_3 = arith.constant 0 : index
    %2 = vector.load %arg2[%c0_2, %c0_3] : memref<32x64xf32, #tpu.memory_space<vmem>>, vector<32x64xf32>
    %cst = arith.constant dense<0.000000e+00> : vector<16x64xf32>
    %3 = tpu.matmul %1, %2, %cst {dimension_numbers = #tpu.dot_dimension_numbers<[1], [0], [0], [1], [0, 0, 1, 1], [], []>} : vector<16x32xf32>, vector<32x64xf32>, vector<16x64xf32> -> vector<16x64xf32>
    %4 = vector.extract_strided_slice %3 {offsets = [0, 0], sizes = [16, 32], strides = [1, 1]} : vector<16x64xf32> to vector<16x32xf32>
    %5 = vector.extract_strided_slice %3 {offsets = [0, 32], sizes = [16, 32], strides = [1, 1]} : vector<16x64xf32> to vector<16x32xf32>
    %c0_4 = arith.constant 0 : index
    %c0_5 = arith.constant 0 : index
    %6 = vector.load %arg5[%c0_4, %c0_5] : memref<1x32xf32, #tpu.memory_space<vmem>>, vector<1x32xf32>
    %7 = vector.broadcast %6 : vector<1x32xf32> to vector<16x32xf32>
    %8 = arith.addf %5, %7 : vector<16x32xf32>
    %9 = arith.negf %8 : vector<16x32xf32>
    %10 = math.exp %9 : vector<16x32xf32>
    %cst_6 = arith.constant 1.000000e+00 : f32
    %11 = vector.broadcast %cst_6 : f32 to vector<16x32xf32>
    %12 = arith.addf %11, %10 : vector<16x32xf32>
    %13 = arith.divf %11, %12 : vector<16x32xf32>
    %14 = math.tanh %4 : vector<16x32xf32>
    %c0_7 = arith.constant 0 : index
    %c0_8 = arith.constant 0 : index
    %15 = vector.load %arg3[%c0_7, %c0_8] : memref<32x8xf32, #tpu.memory_space<vmem>>, vector<32x8xf32>
    %cst_9 = arith.constant dense<0.000000e+00> : vector<16x8xf32>
    %16 = tpu.matmul %14, %15, %cst_9 {dimension_numbers = #tpu.dot_dimension_numbers<[1], [0], [0], [1], [0, 0, 1, 1], [], []>} : vector<16x32xf32>, vector<32x8xf32>, vector<16x8xf32> -> vector<16x8xf32>
    %17 = vector.shape_cast %4 : vector<16x32xf32> to vector<2x8x32xf32>
    %18 = vector.shape_cast %16 : vector<16x8xf32> to vector<2x8x8xf32>
    %19 = vector.shape_cast %13 : vector<16x32xf32> to vector<2x8x32xf32>
    %20 = vector.extract_strided_slice %18 {offsets = [0, 0, 0], sizes = [1, 8, 8], strides = [1, 1, 1]} : vector<2x8x8xf32> to vector<1x8x8xf32>
    %21 = vector.shape_cast %20 : vector<1x8x8xf32> to vector<8x8xf32>
    %22 = tpu.transpose %21, [1, 0] : vector<8x8xf32> -> vector<8x8xf32>
    %23 = vector.extract_strided_slice %18 {offsets = [0, 0, 0], sizes = [1, 8, 1], strides = [1, 1, 1]} : vector<2x8x8xf32> to vector<1x8x1xf32>
    %24 = vector.shape_cast %23 : vector<1x8x1xf32> to vector<8x1xf32>
    %25 = vector.extract_strided_slice %22 {offsets = [4, 0], sizes = [1, 8], strides = [1, 1]} : vector<8x8xf32> to vector<1x8xf32>
    %26 = vector.broadcast %24 : vector<8x1xf32> to vector<8x8xf32>
    %27 = vector.broadcast %25 : vector<1x8xf32> to vector<8x8xf32>
    %28 = arith.addf %26, %27 : vector<8x8xf32>
    %cst_10 = arith.constant 0.000000e+00 : f32
    %29 = vector.broadcast %cst_10 : f32 to vector<8x8xf32>
    %30 = arith.cmpf ogt, %28, %29 : vector<8x8xf32>
    %cst_11 = arith.constant 2.000000e-01 : f32
    %31 = vector.broadcast %cst_11 : f32 to vector<8x8xf32>
    %32 = arith.mulf %31, %28 : vector<8x8xf32>
    %33 = arith.select %30, %28, %32 : vector<8x8xi1>, vector<8x8xf32>
    %cst_12 = arith.constant dense<0xFF800000> : vector<8xf32>
    %34 = vector.multi_reduction <maximumf>, %33, %cst_12 [1] : vector<8x8xf32> to vector<8xf32>
    %35 = vector.shape_cast %34 : vector<8xf32> to vector<8x1xf32>
    %36 = vector.broadcast %35 : vector<8x1xf32> to vector<8x8xf32>
    %37 = arith.subf %33, %36 : vector<8x8xf32>
    %38 = math.exp %37 : vector<8x8xf32>
    %cst_13 = arith.constant dense<0.000000e+00> : vector<8xf32>
    %39 = vector.multi_reduction <add>, %38, %cst_13 [1] : vector<8x8xf32> to vector<8xf32>
    %40 = vector.shape_cast %39 : vector<8xf32> to vector<8x1xf32>
    %41 = vector.extract_strided_slice %17 {offsets = [0, 0, 0], sizes = [1, 8, 8], strides = [1, 1, 1]} : vector<2x8x32xf32> to vector<1x8x8xf32>
    %42 = vector.shape_cast %41 : vector<1x8x8xf32> to vector<8x8xf32>
    %cst_14 = arith.constant dense<0.000000e+00> : vector<8x8xf32>
    %43 = tpu.matmul %38, %42, %cst_14 {dimension_numbers = #tpu.dot_dimension_numbers<[1], [0], [0], [1], [0, 0, 1, 1], [], []>} : vector<8x8xf32>, vector<8x8xf32>, vector<8x8xf32> -> vector<8x8xf32>
    %44 = tpu.reciprocal %40 {approx = true} : vector<8x1xf32> -> vector<8x1xf32>
    %45 = vector.broadcast %44 : vector<8x1xf32> to vector<8x8xf32>
    %46 = arith.mulf %43, %45 : vector<8x8xf32>
    %47 = vector.extract_strided_slice %18 {offsets = [0, 0, 1], sizes = [1, 8, 1], strides = [1, 1, 1]} : vector<2x8x8xf32> to vector<1x8x1xf32>
    %48 = vector.shape_cast %47 : vector<1x8x1xf32> to vector<8x1xf32>
    %49 = vector.extract_strided_slice %22 {offsets = [5, 0], sizes = [1, 8], strides = [1, 1]} : vector<8x8xf32> to vector<1x8xf32>
    %50 = vector.broadcast %48 : vector<8x1xf32> to vector<8x8xf32>
    %51 = vector.broadcast %49 : vector<1x8xf32> to vector<8x8xf32>
    %52 = arith.addf %50, %51 : vector<8x8xf32>
    %cst_15 = arith.constant 0.000000e+00 : f32
    %53 = vector.broadcast %cst_15 : f32 to vector<8x8xf32>
    %54 = arith.cmpf ogt, %52, %53 : vector<8x8xf32>
    %cst_16 = arith.constant 2.000000e-01 : f32
    %55 = vector.broadcast %cst_16 : f32 to vector<8x8xf32>
    %56 = arith.mulf %55, %52 : vector<8x8xf32>
    %57 = arith.select %54, %52, %56 : vector<8x8xi1>, vector<8x8xf32>
    %cst_17 = arith.constant dense<0xFF800000> : vector<8xf32>
    %58 = vector.multi_reduction <maximumf>, %57, %cst_17 [1] : vector<8x8xf32> to vector<8xf32>
    %59 = vector.shape_cast %58 : vector<8xf32> to vector<8x1xf32>
    %60 = vector.broadcast %59 : vector<8x1xf32> to vector<8x8xf32>
    %61 = arith.subf %57, %60 : vector<8x8xf32>
    %62 = math.exp %61 : vector<8x8xf32>
    %cst_18 = arith.constant dense<0.000000e+00> : vector<8xf32>
    %63 = vector.multi_reduction <add>, %62, %cst_18 [1] : vector<8x8xf32> to vector<8xf32>
    %64 = vector.shape_cast %63 : vector<8xf32> to vector<8x1xf32>
    %65 = vector.extract_strided_slice %17 {offsets = [0, 0, 8], sizes = [1, 8, 8], strides = [1, 1, 1]} : vector<2x8x32xf32> to vector<1x8x8xf32>
    %66 = vector.shape_cast %65 : vector<1x8x8xf32> to vector<8x8xf32>
    %cst_19 = arith.constant dense<0.000000e+00> : vector<8x8xf32>
    %67 = tpu.matmul %62, %66, %cst_19 {dimension_numbers = #tpu.dot_dimension_numbers<[1], [0], [0], [1], [0, 0, 1, 1], [], []>} : vector<8x8xf32>, vector<8x8xf32>, vector<8x8xf32> -> vector<8x8xf32>
    %68 = tpu.reciprocal %64 {approx = true} : vector<8x1xf32> -> vector<8x1xf32>
    %69 = vector.broadcast %68 : vector<8x1xf32> to vector<8x8xf32>
    %70 = arith.mulf %67, %69 : vector<8x8xf32>
    %71 = vector.extract_strided_slice %18 {offsets = [0, 0, 2], sizes = [1, 8, 1], strides = [1, 1, 1]} : vector<2x8x8xf32> to vector<1x8x1xf32>
    %72 = vector.shape_cast %71 : vector<1x8x1xf32> to vector<8x1xf32>
    %73 = vector.extract_strided_slice %22 {offsets = [6, 0], sizes = [1, 8], strides = [1, 1]} : vector<8x8xf32> to vector<1x8xf32>
    %74 = vector.broadcast %72 : vector<8x1xf32> to vector<8x8xf32>
    %75 = vector.broadcast %73 : vector<1x8xf32> to vector<8x8xf32>
    %76 = arith.addf %74, %75 : vector<8x8xf32>
    %cst_20 = arith.constant 0.000000e+00 : f32
    %77 = vector.broadcast %cst_20 : f32 to vector<8x8xf32>
    %78 = arith.cmpf ogt, %76, %77 : vector<8x8xf32>
    %cst_21 = arith.constant 2.000000e-01 : f32
    %79 = vector.broadcast %cst_21 : f32 to vector<8x8xf32>
    %80 = arith.mulf %79, %76 : vector<8x8xf32>
    %81 = arith.select %78, %76, %80 : vector<8x8xi1>, vector<8x8xf32>
    %cst_22 = arith.constant dense<0xFF800000> : vector<8xf32>
    %82 = vector.multi_reduction <maximumf>, %81, %cst_22 [1] : vector<8x8xf32> to vector<8xf32>
    %83 = vector.shape_cast %82 : vector<8xf32> to vector<8x1xf32>
    %84 = vector.broadcast %83 : vector<8x1xf32> to vector<8x8xf32>
    %85 = arith.subf %81, %84 : vector<8x8xf32>
    %86 = math.exp %85 : vector<8x8xf32>
    %cst_23 = arith.constant dense<0.000000e+00> : vector<8xf32>
    %87 = vector.multi_reduction <add>, %86, %cst_23 [1] : vector<8x8xf32> to vector<8xf32>
    %88 = vector.shape_cast %87 : vector<8xf32> to vector<8x1xf32>
    %89 = vector.extract_strided_slice %17 {offsets = [0, 0, 16], sizes = [1, 8, 8], strides = [1, 1, 1]} : vector<2x8x32xf32> to vector<1x8x8xf32>
    %90 = vector.shape_cast %89 : vector<1x8x8xf32> to vector<8x8xf32>
    %cst_24 = arith.constant dense<0.000000e+00> : vector<8x8xf32>
    %91 = tpu.matmul %86, %90, %cst_24 {dimension_numbers = #tpu.dot_dimension_numbers<[1], [0], [0], [1], [0, 0, 1, 1], [], []>} : vector<8x8xf32>, vector<8x8xf32>, vector<8x8xf32> -> vector<8x8xf32>
    %92 = tpu.reciprocal %88 {approx = true} : vector<8x1xf32> -> vector<8x1xf32>
    %93 = vector.broadcast %92 : vector<8x1xf32> to vector<8x8xf32>
    %94 = arith.mulf %91, %93 : vector<8x8xf32>
    %95 = vector.extract_strided_slice %18 {offsets = [0, 0, 3], sizes = [1, 8, 1], strides = [1, 1, 1]} : vector<2x8x8xf32> to vector<1x8x1xf32>
    %96 = vector.shape_cast %95 : vector<1x8x1xf32> to vector<8x1xf32>
    %97 = vector.extract_strided_slice %22 {offsets = [7, 0], sizes = [1, 8], strides = [1, 1]} : vector<8x8xf32> to vector<1x8xf32>
    %98 = vector.broadcast %96 : vector<8x1xf32> to vector<8x8xf32>
    %99 = vector.broadcast %97 : vector<1x8xf32> to vector<8x8xf32>
    %100 = arith.addf %98, %99 : vector<8x8xf32>
    %cst_25 = arith.constant 0.000000e+00 : f32
    %101 = vector.broadcast %cst_25 : f32 to vector<8x8xf32>
    %102 = arith.cmpf ogt, %100, %101 : vector<8x8xf32>
    %cst_26 = arith.constant 2.000000e-01 : f32
    %103 = vector.broadcast %cst_26 : f32 to vector<8x8xf32>
    %104 = arith.mulf %103, %100 : vector<8x8xf32>
    %105 = arith.select %102, %100, %104 : vector<8x8xi1>, vector<8x8xf32>
    %cst_27 = arith.constant dense<0xFF800000> : vector<8xf32>
    %106 = vector.multi_reduction <maximumf>, %105, %cst_27 [1] : vector<8x8xf32> to vector<8xf32>
    %107 = vector.shape_cast %106 : vector<8xf32> to vector<8x1xf32>
    %108 = vector.broadcast %107 : vector<8x1xf32> to vector<8x8xf32>
    %109 = arith.subf %105, %108 : vector<8x8xf32>
    %110 = math.exp %109 : vector<8x8xf32>
    %cst_28 = arith.constant dense<0.000000e+00> : vector<8xf32>
    %111 = vector.multi_reduction <add>, %110, %cst_28 [1] : vector<8x8xf32> to vector<8xf32>
    %112 = vector.shape_cast %111 : vector<8xf32> to vector<8x1xf32>
    %113 = vector.extract_strided_slice %17 {offsets = [0, 0, 24], sizes = [1, 8, 8], strides = [1, 1, 1]} : vector<2x8x32xf32> to vector<1x8x8xf32>
    %114 = vector.shape_cast %113 : vector<1x8x8xf32> to vector<8x8xf32>
    %cst_29 = arith.constant dense<0.000000e+00> : vector<8x8xf32>
    %115 = tpu.matmul %110, %114, %cst_29 {dimension_numbers = #tpu.dot_dimension_numbers<[1], [0], [0], [1], [0, 0, 1, 1], [], []>} : vector<8x8xf32>, vector<8x8xf32>, vector<8x8xf32> -> vector<8x8xf32>
    %116 = tpu.reciprocal %112 {approx = true} : vector<8x1xf32> -> vector<8x1xf32>
    %117 = vector.broadcast %116 : vector<8x1xf32> to vector<8x8xf32>
    %118 = arith.mulf %115, %117 : vector<8x8xf32>
    %119 = tpu.concatenate %46, %70, %94, %118 in 1 : vector<8x8xf32>, vector<8x8xf32>, vector<8x8xf32>, vector<8x8xf32> -> vector<8x32xf32>
    %c0_30 = arith.constant 0 : index
    %c0_31 = arith.constant 0 : index
    %120 = vector.load %arg4[%c0_30, %c0_31] : memref<1x32xf32, #tpu.memory_space<vmem>>, vector<1x32xf32>
    %121 = vector.broadcast %120 : vector<1x32xf32> to vector<8x32xf32>
    %122 = arith.addf %119, %121 : vector<8x32xf32>
    %cst_32 = arith.constant 0.000000e+00 : f32
    %123 = vector.broadcast %cst_32 : f32 to vector<8x32xf32>
    %124 = arith.cmpf ogt, %122, %123 : vector<8x32xf32>
    %cst_33 = arith.constant 0.000000e+00 : f32
    %125 = vector.broadcast %cst_33 : f32 to vector<8x32xf32>
    %126 = arith.minimumf %122, %125 : vector<8x32xf32>
    %127 = math.exp %126 : vector<8x32xf32>
    %cst_34 = arith.constant 1.000000e+00 : f32
    %128 = vector.broadcast %cst_34 : f32 to vector<8x32xf32>
    %129 = arith.subf %127, %128 : vector<8x32xf32>
    %130 = arith.select %124, %122, %129 : vector<8x32xi1>, vector<8x32xf32>
    %131 = vector.extract_strided_slice %19 {offsets = [0, 0, 0], sizes = [1, 8, 32], strides = [1, 1, 1]} : vector<2x8x32xf32> to vector<1x8x32xf32>
    %132 = vector.shape_cast %131 : vector<1x8x32xf32> to vector<8x32xf32>
    %133 = arith.mulf %132, %130 : vector<8x32xf32>
    %cst_35 = arith.constant 1.000000e+00 : f32
    %134 = vector.broadcast %cst_35 : f32 to vector<8x32xf32>
    %135 = arith.subf %134, %132 : vector<8x32xf32>
    %136 = vector.extract_strided_slice %0 {offsets = [0, 0, 0], sizes = [1, 8, 32], strides = [1, 1, 1]} : vector<2x8x32xf32> to vector<1x8x32xf32>
    %137 = vector.shape_cast %136 : vector<1x8x32xf32> to vector<8x32xf32>
    %138 = arith.mulf %135, %137 : vector<8x32xf32>
    %139 = arith.addf %133, %138 : vector<8x32xf32>
    %c0_36 = arith.constant 0 : index
    %c0_37 = arith.constant 0 : index
    %c0_38 = arith.constant 0 : index
    %140 = vector.load %arg6[%c0_36, %c0_37, %c0_38] : memref<2x8x32xf32, #tpu.memory_space<vmem>>, vector<1x8x32xf32>
    %141 = vector.shape_cast %140 : vector<1x8x32xf32> to vector<8x32xf32>
    %142 = vector.shape_cast %139 : vector<8x32xf32> to vector<1x8x32xf32>
    tpu.vector_store %arg6[%c0_36, %c0_37, %c0_38], %142 {strides = array<i32>} : memref<2x8x32xf32, #tpu.memory_space<vmem>>, vector<1x8x32xf32>,
    %143 = vector.extract_strided_slice %18 {offsets = [1, 0, 0], sizes = [1, 8, 8], strides = [1, 1, 1]} : vector<2x8x8xf32> to vector<1x8x8xf32>
    %144 = vector.shape_cast %143 : vector<1x8x8xf32> to vector<8x8xf32>
    %145 = tpu.transpose %144, [1, 0] : vector<8x8xf32> -> vector<8x8xf32>
    %146 = vector.extract_strided_slice %18 {offsets = [1, 0, 0], sizes = [1, 8, 1], strides = [1, 1, 1]} : vector<2x8x8xf32> to vector<1x8x1xf32>
    %147 = vector.shape_cast %146 : vector<1x8x1xf32> to vector<8x1xf32>
    %148 = vector.extract_strided_slice %145 {offsets = [4, 0], sizes = [1, 8], strides = [1, 1]} : vector<8x8xf32> to vector<1x8xf32>
    %149 = vector.broadcast %147 : vector<8x1xf32> to vector<8x8xf32>
    %150 = vector.broadcast %148 : vector<1x8xf32> to vector<8x8xf32>
    %151 = arith.addf %149, %150 : vector<8x8xf32>
    %cst_39 = arith.constant 0.000000e+00 : f32
    %152 = vector.broadcast %cst_39 : f32 to vector<8x8xf32>
    %153 = arith.cmpf ogt, %151, %152 : vector<8x8xf32>
    %cst_40 = arith.constant 2.000000e-01 : f32
    %154 = vector.broadcast %cst_40 : f32 to vector<8x8xf32>
    %155 = arith.mulf %154, %151 : vector<8x8xf32>
    %156 = arith.select %153, %151, %155 : vector<8x8xi1>, vector<8x8xf32>
    %cst_41 = arith.constant dense<0xFF800000> : vector<8xf32>
    %157 = vector.multi_reduction <maximumf>, %156, %cst_41 [1] : vector<8x8xf32> to vector<8xf32>
    %158 = vector.shape_cast %157 : vector<8xf32> to vector<8x1xf32>
    %159 = vector.broadcast %158 : vector<8x1xf32> to vector<8x8xf32>
    %160 = arith.subf %156, %159 : vector<8x8xf32>
    %161 = math.exp %160 : vector<8x8xf32>
    %cst_42 = arith.constant dense<0.000000e+00> : vector<8xf32>
    %162 = vector.multi_reduction <add>, %161, %cst_42 [1] : vector<8x8xf32> to vector<8xf32>
    %163 = vector.shape_cast %162 : vector<8xf32> to vector<8x1xf32>
    %164 = vector.extract_strided_slice %17 {offsets = [1, 0, 0], sizes = [1, 8, 8], strides = [1, 1, 1]} : vector<2x8x32xf32> to vector<1x8x8xf32>
    %165 = vector.shape_cast %164 : vector<1x8x8xf32> to vector<8x8xf32>
    %cst_43 = arith.constant dense<0.000000e+00> : vector<8x8xf32>
    %166 = tpu.matmul %161, %165, %cst_43 {dimension_numbers = #tpu.dot_dimension_numbers<[1], [0], [0], [1], [0, 0, 1, 1], [], []>} : vector<8x8xf32>, vector<8x8xf32>, vector<8x8xf32> -> vector<8x8xf32>
    %167 = tpu.reciprocal %163 {approx = true} : vector<8x1xf32> -> vector<8x1xf32>
    %168 = vector.broadcast %167 : vector<8x1xf32> to vector<8x8xf32>
    %169 = arith.mulf %166, %168 : vector<8x8xf32>
    %170 = vector.extract_strided_slice %18 {offsets = [1, 0, 1], sizes = [1, 8, 1], strides = [1, 1, 1]} : vector<2x8x8xf32> to vector<1x8x1xf32>
    %171 = vector.shape_cast %170 : vector<1x8x1xf32> to vector<8x1xf32>
    %172 = vector.extract_strided_slice %145 {offsets = [5, 0], sizes = [1, 8], strides = [1, 1]} : vector<8x8xf32> to vector<1x8xf32>
    %173 = vector.broadcast %171 : vector<8x1xf32> to vector<8x8xf32>
    %174 = vector.broadcast %172 : vector<1x8xf32> to vector<8x8xf32>
    %175 = arith.addf %173, %174 : vector<8x8xf32>
    %cst_44 = arith.constant 0.000000e+00 : f32
    %176 = vector.broadcast %cst_44 : f32 to vector<8x8xf32>
    %177 = arith.cmpf ogt, %175, %176 : vector<8x8xf32>
    %cst_45 = arith.constant 2.000000e-01 : f32
    %178 = vector.broadcast %cst_45 : f32 to vector<8x8xf32>
    %179 = arith.mulf %178, %175 : vector<8x8xf32>
    %180 = arith.select %177, %175, %179 : vector<8x8xi1>, vector<8x8xf32>
    %cst_46 = arith.constant dense<0xFF800000> : vector<8xf32>
    %181 = vector.multi_reduction <maximumf>, %180, %cst_46 [1] : vector<8x8xf32> to vector<8xf32>
    %182 = vector.shape_cast %181 : vector<8xf32> to vector<8x1xf32>
    %183 = vector.broadcast %182 : vector<8x1xf32> to vector<8x8xf32>
    %184 = arith.subf %180, %183 : vector<8x8xf32>
    %185 = math.exp %184 : vector<8x8xf32>
    %cst_47 = arith.constant dense<0.000000e+00> : vector<8xf32>
    %186 = vector.multi_reduction <add>, %185, %cst_47 [1] : vector<8x8xf32> to vector<8xf32>
    %187 = vector.shape_cast %186 : vector<8xf32> to vector<8x1xf32>
    %188 = vector.extract_strided_slice %17 {offsets = [1, 0, 8], sizes = [1, 8, 8], strides = [1, 1, 1]} : vector<2x8x32xf32> to vector<1x8x8xf32>
    %189 = vector.shape_cast %188 : vector<1x8x8xf32> to vector<8x8xf32>
    %cst_48 = arith.constant dense<0.000000e+00> : vector<8x8xf32>
    %190 = tpu.matmul %185, %189, %cst_48 {dimension_numbers = #tpu.dot_dimension_numbers<[1], [0], [0], [1], [0, 0, 1, 1], [], []>} : vector<8x8xf32>, vector<8x8xf32>, vector<8x8xf32> -> vector<8x8xf32>
    %191 = tpu.reciprocal %187 {approx = true} : vector<8x1xf32> -> vector<8x1xf32>
    %192 = vector.broadcast %191 : vector<8x1xf32> to vector<8x8xf32>
    %193 = arith.mulf %190, %192 : vector<8x8xf32>
    %194 = vector.extract_strided_slice %18 {offsets = [1, 0, 2], sizes = [1, 8, 1], strides = [1, 1, 1]} : vector<2x8x8xf32> to vector<1x8x1xf32>
    %195 = vector.shape_cast %194 : vector<1x8x1xf32> to vector<8x1xf32>
    %196 = vector.extract_strided_slice %145 {offsets = [6, 0], sizes = [1, 8], strides = [1, 1]} : vector<8x8xf32> to vector<1x8xf32>
    %197 = vector.broadcast %195 : vector<8x1xf32> to vector<8x8xf32>
    %198 = vector.broadcast %196 : vector<1x8xf32> to vector<8x8xf32>
    %199 = arith.addf %197, %198 : vector<8x8xf32>
    %cst_49 = arith.constant 0.000000e+00 : f32
    %200 = vector.broadcast %cst_49 : f32 to vector<8x8xf32>
    %201 = arith.cmpf ogt, %199, %200 : vector<8x8xf32>
    %cst_50 = arith.constant 2.000000e-01 : f32
    %202 = vector.broadcast %cst_50 : f32 to vector<8x8xf32>
    %203 = arith.mulf %202, %199 : vector<8x8xf32>
    %204 = arith.select %201, %199, %203 : vector<8x8xi1>, vector<8x8xf32>
    %cst_51 = arith.constant dense<0xFF800000> : vector<8xf32>
    %205 = vector.multi_reduction <maximumf>, %204, %cst_51 [1] : vector<8x8xf32> to vector<8xf32>
    %206 = vector.shape_cast %205 : vector<8xf32> to vector<8x1xf32>
    %207 = vector.broadcast %206 : vector<8x1xf32> to vector<8x8xf32>
    %208 = arith.subf %204, %207 : vector<8x8xf32>
    %209 = math.exp %208 : vector<8x8xf32>
    %cst_52 = arith.constant dense<0.000000e+00> : vector<8xf32>
    %210 = vector.multi_reduction <add>, %209, %cst_52 [1] : vector<8x8xf32> to vector<8xf32>
    %211 = vector.shape_cast %210 : vector<8xf32> to vector<8x1xf32>
    %212 = vector.extract_strided_slice %17 {offsets = [1, 0, 16], sizes = [1, 8, 8], strides = [1, 1, 1]} : vector<2x8x32xf32> to vector<1x8x8xf32>
    %213 = vector.shape_cast %212 : vector<1x8x8xf32> to vector<8x8xf32>
    %cst_53 = arith.constant dense<0.000000e+00> : vector<8x8xf32>
    %214 = tpu.matmul %209, %213, %cst_53 {dimension_numbers = #tpu.dot_dimension_numbers<[1], [0], [0], [1], [0, 0, 1, 1], [], []>} : vector<8x8xf32>, vector<8x8xf32>, vector<8x8xf32> -> vector<8x8xf32>
    %215 = tpu.reciprocal %211 {approx = true} : vector<8x1xf32> -> vector<8x1xf32>
    %216 = vector.broadcast %215 : vector<8x1xf32> to vector<8x8xf32>
    %217 = arith.mulf %214, %216 : vector<8x8xf32>
    %218 = vector.extract_strided_slice %18 {offsets = [1, 0, 3], sizes = [1, 8, 1], strides = [1, 1, 1]} : vector<2x8x8xf32> to vector<1x8x1xf32>
    %219 = vector.shape_cast %218 : vector<1x8x1xf32> to vector<8x1xf32>
    %220 = vector.extract_strided_slice %145 {offsets = [7, 0], sizes = [1, 8], strides = [1, 1]} : vector<8x8xf32> to vector<1x8xf32>
    %221 = vector.broadcast %219 : vector<8x1xf32> to vector<8x8xf32>
    %222 = vector.broadcast %220 : vector<1x8xf32> to vector<8x8xf32>
    %223 = arith.addf %221, %222 : vector<8x8xf32>
    %cst_54 = arith.constant 0.000000e+00 : f32
    %224 = vector.broadcast %cst_54 : f32 to vector<8x8xf32>
    %225 = arith.cmpf ogt, %223, %224 : vector<8x8xf32>
    %cst_55 = arith.constant 2.000000e-01 : f32
    %226 = vector.broadcast %cst_55 : f32 to vector<8x8xf32>
    %227 = arith.mulf %226, %223 : vector<8x8xf32>
    %228 = arith.select %225, %223, %227 : vector<8x8xi1>, vector<8x8xf32>
    %cst_56 = arith.constant dense<0xFF800000> : vector<8xf32>
    %229 = vector.multi_reduction <maximumf>, %228, %cst_56 [1] : vector<8x8xf32> to vector<8xf32>
    %230 = vector.shape_cast %229 : vector<8xf32> to vector<8x1xf32>
    %231 = vector.broadcast %230 : vector<8x1xf32> to vector<8x8xf32>
    %232 = arith.subf %228, %231 : vector<8x8xf32>
    %233 = math.exp %232 : vector<8x8xf32>
    %cst_57 = arith.constant dense<0.000000e+00> : vector<8xf32>
    %234 = vector.multi_reduction <add>, %233, %cst_57 [1] : vector<8x8xf32> to vector<8xf32>
    %235 = vector.shape_cast %234 : vector<8xf32> to vector<8x1xf32>
    %236 = vector.extract_strided_slice %17 {offsets = [1, 0, 24], sizes = [1, 8, 8], strides = [1, 1, 1]} : vector<2x8x32xf32> to vector<1x8x8xf32>
    %237 = vector.shape_cast %236 : vector<1x8x8xf32> to vector<8x8xf32>
    %cst_58 = arith.constant dense<0.000000e+00> : vector<8x8xf32>
    %238 = tpu.matmul %233, %237, %cst_58 {dimension_numbers = #tpu.dot_dimension_numbers<[1], [0], [0], [1], [0, 0, 1, 1], [], []>} : vector<8x8xf32>, vector<8x8xf32>, vector<8x8xf32> -> vector<8x8xf32>
    %239 = tpu.reciprocal %235 {approx = true} : vector<8x1xf32> -> vector<8x1xf32>
    %240 = vector.broadcast %239 : vector<8x1xf32> to vector<8x8xf32>
    %241 = arith.mulf %238, %240 : vector<8x8xf32>
    %242 = tpu.concatenate %169, %193, %217, %241 in 1 : vector<8x8xf32>, vector<8x8xf32>, vector<8x8xf32>, vector<8x8xf32> -> vector<8x32xf32>
    %c0_59 = arith.constant 0 : index
    %c0_60 = arith.constant 0 : index
    %243 = vector.load %arg4[%c0_59, %c0_60] : memref<1x32xf32, #tpu.memory_space<vmem>>, vector<1x32xf32>
    %244 = vector.broadcast %243 : vector<1x32xf32> to vector<8x32xf32>
    %245 = arith.addf %242, %244 : vector<8x32xf32>
    %cst_61 = arith.constant 0.000000e+00 : f32
    %246 = vector.broadcast %cst_61 : f32 to vector<8x32xf32>
    %247 = arith.cmpf ogt, %245, %246 : vector<8x32xf32>
    %cst_62 = arith.constant 0.000000e+00 : f32
    %248 = vector.broadcast %cst_62 : f32 to vector<8x32xf32>
    %249 = arith.minimumf %245, %248 : vector<8x32xf32>
    %250 = math.exp %249 : vector<8x32xf32>
    %cst_63 = arith.constant 1.000000e+00 : f32
    %251 = vector.broadcast %cst_63 : f32 to vector<8x32xf32>
    %252 = arith.subf %250, %251 : vector<8x32xf32>
    %253 = arith.select %247, %245, %252 : vector<8x32xi1>, vector<8x32xf32>
    %254 = vector.extract_strided_slice %19 {offsets = [1, 0, 0], sizes = [1, 8, 32], strides = [1, 1, 1]} : vector<2x8x32xf32> to vector<1x8x32xf32>
    %255 = vector.shape_cast %254 : vector<1x8x32xf32> to vector<8x32xf32>
    %256 = arith.mulf %255, %253 : vector<8x32xf32>
    %cst_64 = arith.constant 1.000000e+00 : f32
    %257 = vector.broadcast %cst_64 : f32 to vector<8x32xf32>
    %258 = arith.subf %257, %255 : vector<8x32xf32>
    %259 = vector.extract_strided_slice %0 {offsets = [1, 0, 0], sizes = [1, 8, 32], strides = [1, 1, 1]} : vector<2x8x32xf32> to vector<1x8x32xf32>
    %260 = vector.shape_cast %259 : vector<1x8x32xf32> to vector<8x32xf32>
    %261 = arith.mulf %258, %260 : vector<8x32xf32>
    %262 = arith.addf %256, %261 : vector<8x32xf32>
    %c1 = arith.constant 1 : index
    %c0_65 = arith.constant 0 : index
    %c0_66 = arith.constant 0 : index
    %263 = vector.load %arg6[%c1, %c0_65, %c0_66] : memref<2x8x32xf32, #tpu.memory_space<vmem>>, vector<1x8x32xf32>
    %264 = vector.shape_cast %263 : vector<1x8x32xf32> to vector<8x32xf32>
    %265 = vector.shape_cast %262 : vector<8x32xf32> to vector<1x8x32xf32>
    tpu.vector_store %arg6[%c1, %c0_65, %c0_66], %265 {strides = array<i32>} : memref<2x8x32xf32, #tpu.memory_space<vmem>>, vector<1x8x32xf32>,
    return
  }
  func.func @transform_0(%arg0: i32) -> (i32, i32, i32) {
    %c0_i32 = arith.constant 0 : i32
    %c0_i32_0 = arith.constant 0 : i32
    %c0_i32_1 = arith.constant 0 : i32
    return %arg0, %c0_i32, %c0_i32_0 : i32, i32, i32
  }
  func.func @transform_1(%arg0: i32) -> (i32, i32) {
    %c0_i32 = arith.constant 0 : i32
    %c0_i32_0 = arith.constant 0 : i32
    %c0_i32_1 = arith.constant 0 : i32
    return %c0_i32, %c0_i32_0 : i32, i32
  }
  func.func @transform_2(%arg0: i32) -> (i32, i32) {
    %c0_i32 = arith.constant 0 : i32
    %c0_i32_0 = arith.constant 0 : i32
    %c0_i32_1 = arith.constant 0 : i32
    return %c0_i32, %c0_i32_0 : i32, i32
  }
  func.func @transform_3(%arg0: i32) -> (i32, i32) {
    %c0_i32 = arith.constant 0 : i32
    %c0_i32_0 = arith.constant 0 : i32
    %c0_i32_1 = arith.constant 0 : i32
    return %c0_i32, %c0_i32_0 : i32, i32
  }
  func.func @transform_4(%arg0: i32) -> (i32, i32) {
    %c0_i32 = arith.constant 0 : i32
    %c0_i32_0 = arith.constant 0 : i32
    %c0_i32_1 = arith.constant 0 : i32
    return %c0_i32, %c0_i32_0 : i32, i32
  }
  func.func @transform_5(%arg0: i32) -> (i32, i32, i32) {
    %c0_i32 = arith.constant 0 : i32
    %c0_i32_0 = arith.constant 0 : i32
    %c0_i32_1 = arith.constant 0 : i32
    return %arg0, %c0_i32, %c0_i32_0 : i32, i32, i32
  }
}

</mosaic_0001>

<llo_original>
// kernel: tpu_custom_call.1
$region0: #{tpu_custom_call.1}
  #allocation0 [shape = 'u32[]', space=smem, size = 0x4, offset = 0x4, fixed_abs, tag = 'smem constant byte address 0x4 - core index']
  #allocation1 [shape = 'u32[144,128]{1,0:T(1,128)}', space=vmem, size = 0x12000, scoped, tag = 'internal scratch']
  %s0 = inlined_call_operand.hbm [shape: f32[2,8,32], index: 0, kind: input, shape index: {}]
  %s1 = inlined_call_operand.vmem [shape: f32[32,64], index: 1, kind: input, shape index: {}]
  %s2 = inlined_call_operand.vmem [shape: f32[32,8], index: 2, kind: input, shape index: {}]
  %s3 = inlined_call_operand.vmem [shape: f32[1,32], index: 3, kind: input, shape index: {}]
  %s4 = inlined_call_operand.vmem [shape: f32[1,32], index: 4, kind: input, shape index: {}]
  %s5 = inlined_call_operand.hbm [shape: f32[2,8,32], index: 5, kind: output, shape index: {}]
  %s6 = sld [smem:[#allocation0]]
  $region34: #{tpu_custom_call.1} parent=0
    _
  %s8 = ssub.s32 1, %s6
  %s9 = scalar_select 0, %s8, %s6
  $region1: #{tpu_custom_call.1} parent=0
    #allocation2 [shape = 'u8[8192]{0}', space=vmem, size = 0x2000, scoped, tag = 'input window, operand 0, single buffered']
    #allocation3 [shape = 's32[1]{0}', space=sflag, size = 0x4, scoped, tag = 'scoped memory for tpu_custom_call.1']
    #allocation4 [shape = 's32[1]{0}', space=sflag, size = 0x4, scoped, tag = 'scoped memory for tpu_custom_call.1']
    #allocation5 [shape = 'u8[8192]{0}', space=vmem, size = 0x2000, scoped, tag = 'output window, operand 0, single buffered']
    %10 = vsyncpa [#allocation3], 0
    %11 = vsyncpa [#allocation4], 0
    // Predicated region
    $region2: #{tpu_custom_call.1} parent=1 // pred_check
      _
    $region3: #{tpu_custom_call.1} parent=1 // pred_check_branch
      %13 = sbr.rel (0) target = $region5
    $region4: #{tpu_custom_call.1} parent=1 // pred_region
      %s15 = ssub.s32 256, 256
      %16 = vsyncadd [#allocation3], %s15
      %s17 = sshll.u32 [#allocation2], 4
      %s18 = int_to_ptr.vmem [resolvable:$true] %s17
      %23 = dma.hbm_to_vmem [thread:$0]  %s0, 256, %s18, [#allocation3], 128, 128, 8
    $region5: #{tpu_custom_call.1} parent=1 // pred_fallthru
      _
    // Predicated region
    $region6: #{tpu_custom_call.1} parent=1 // pred_check
      _
    $region7: #{tpu_custom_call.1} parent=1 // pred_check_branch
      %25 = sbr.rel (0) target = $region9
    $region8: #{tpu_custom_call.1} parent=1 // pred_region
      _
    $region9: #{tpu_custom_call.1} parent=1 // pred_fallthru
      _
    // Predicated region
    $region10: #{tpu_custom_call.1} parent=1 // pred_check
      _
    $region11: #{tpu_custom_call.1} parent=1 // pred_check_branch
      %27 = sbr.rel (0) target = $region13
    $region12: #{tpu_custom_call.1} parent=1 // pred_region
      _
    $region13: #{tpu_custom_call.1} parent=1 // pred_fallthru
      _
    // Predicated region
    $region14: #{tpu_custom_call.1} parent=1 // pred_check
      _
    $region15: #{tpu_custom_call.1} parent=1 // pred_check_branch
      %29 = sbr.rel (0) target = $region17
    $region16: #{tpu_custom_call.1} parent=1 // pred_region
      _
    $region17: #{tpu_custom_call.1} parent=1 // pred_fallthru
      _
    // Predicated region
    $region18: #{tpu_custom_call.1} parent=1 // pred_check
      _
    $region19: #{tpu_custom_call.1} parent=1 // pred_check_branch
      %31 = sbr.rel (0) target = $region21
    $region20: #{tpu_custom_call.1} parent=1 // pred_region
      _
    $region21: #{tpu_custom_call.1} parent=1 // pred_fallthru
      _
    // Predicated region
    $region22: #{tpu_custom_call.1} parent=1 // pred_check
      _
    $region23: #{tpu_custom_call.1} parent=1 // pred_check_branch
      %33 = sbr.rel (0) target = $region25
    $region24: #{tpu_custom_call.1} parent=1 // pred_region
      %34 = dma.done [#allocation3], 256
    $region25: #{tpu_custom_call.1} parent=1 // pred_fallthru
      _
    %v35 = vld [vmem:[#allocation2] sm:$0xff]
    %v36 = vld [vmem:[#allocation2 + $0x8] sm:$0xff]
    %v37 = vld [vmem:[%s1] sm:$0xff]
    %v38 = vld [vmem:[%s1 + $0x8] sm:$0xff]
    %v39 = vld [vmem:[%s1 + $0x10] sm:$0xff]
    %v40 = vld [vmem:[%s1 + $0x18] sm:$0xff]
    %vm41 = vcmask 261120
    %v43 = vsel %vm41, %v35, 0
    %v46 = vsel %vm41, %v36, 0
    %48 = vmatprep.subr.mxu0 0.0
    %49 = vmatpush1.msra.mxu0 %v37
    %50 = vmatprep.subr.mxu0 0.0
    %51 = vmatpush1.msra.mxu0 %v38
    %52 = vmatprep.subr.mxu0 0.0
    %53 = vmatpush1.msra.mxu0 %v39
    %54 = vmatprep.subr.mxu0 0.0
    %55 = vmatpush1.msra.mxu0 %v40
    %56 = vmatprep.subr.mxu0 0.0
    %57 = vmatpush1.msra.mxu0 0.0
    %58 = vmatprep.subr.mxu0 0.0
    %59 = vmatpush1.msra.mxu0 0.0
    %60 = vmatprep.subr.mxu0 0.0
    %61 = vmatpush1.msra.mxu0 0.0
    %62 = vmatprep.subr.mxu0 0.0
    %63 = vmatpush1.msra.mxu0 0.0
    %64 = vmatprep.subr.mxu0 0.0
    %65 = vmatpush1.msra.mxu0 0.0
    %66 = vmatprep.subr.mxu0 0.0
    %67 = vmatpush1.msra.mxu0 0.0
    %68 = vmatprep.subr.mxu0 0.0
    %69 = vmatpush1.msra.mxu0 0.0
    %70 = vmatprep.subr.mxu0 0.0
    %71 = vmatpush1.msra.mxu0 0.0
    %72 = vmatprep.subr.mxu0 0.0
    %73 = vmatpush1.msra.mxu0 0.0
    %74 = vmatprep.subr.mxu0 0.0
    %75 = vmatpush1.msra.mxu0 0.0
    %76 = vmatprep.subr.mxu0 0.0
    %77 = vmatpush1.msra.mxu0 0.0
    %78 = vmatprep.subr.mxu0 0.0
    %79 = vmatpush1.msra.mxu0 0.0
    %80 = vmatprep.subr.mxu0 0.0
    %81 = vmatpush1.msra.mxu0 0.0
    %82 = vmatprep.subr.mxu0 0.0
    %83 = vmatpush1.msra.mxu0 0.0
    %84 = vmatprep.subr.mxu0 0.0
    %85 = vmatpush1.msra.mxu0 0.0
    %86 = vmatprep.subr.mxu0 0.0
    %87 = vmatpush1.msra.mxu0 0.0
    %88 = vmatprep.subr.mxu0 0.0
    %89 = vmatpush1.msra.mxu0 0.0
    %90 = vmatprep.subr.mxu0 0.0
    %91 = vmatpush1.msra.mxu0 0.0
    %92 = vmatprep.subr.mxu0 0.0
    %93 = vmatpush1.msra.mxu0 0.0
    %94 = vmatprep.subr.mxu0 0.0
    %95 = vmatpush1.msra.mxu0 0.0
    %96 = vmatprep.subr.mxu0 0.0
    %97 = vmatpush1.msra.mxu0 0.0
    %98 = vmatprep.subr.mxu0 0.0
    %99 = vmatpush1.msra.mxu0 0.0
    %100 = vmatprep.subr.mxu0 0.0
    %101 = vmatpush1.msra.mxu0 0.0
    %102 = vmatprep.subr.mxu0 0.0
    %103 = vmatpush1.msra.mxu0 0.0
    %104 = vmatprep.subr.mxu0 0.0
    %105 = vmatpush1.msra.mxu0 0.0
    %106 = vmatprep.subr.mxu0 0.0
    %107 = vmatpush1.msra.mxu0 0.0
    %108 = vmatprep.subr.mxu0 0.0
    %109 = vmatpush1.msra.mxu0 0.0
    %110 = vmatprep.subr.mxu0 0.0
    %111 = vmatpush1.msra.mxu0 0.0
    %112 = vmatprep.mubr.f32.mxu0 0.0
    %113 = vmatmul.mubr.f32.gmra.mrb[0].mxu0 %v43
    %v114 = vpop.f32.mrb[0].mxu0
    %v115 = vadd.f32 0.0, %v114
    %v116 = vpop.f32.mrb[0].mxu0
    %117 = vmatprep.mubr.f32.mxu0 0.0
    %118 = vmatmul.mubr.f32.gmra.mrb[0].mxu0 %v46
    %v119 = vpop.f32.mrb[0].mxu0
    %v120 = vadd.f32 0.0, %v119
    %v121 = vpop.f32.mrb[0].mxu0
    %122 = vdwg.mxu0
    %v123 = vld [vmem:[%s4] sm:$0x1]
    %v125 = vlaneseq
    %v126 = vshrl.u32 %v125, 7
    %v127 = vsub.s32 0, %v126
    %v128 = vrot.slane %v123, %v127
    %129 = vrot.lane.b32.xlu0 %v128, 32
    %v130 = vpop.permute.xlu0 %129
    %v132 = vadd.f32 %v115, %v130
    %v133 = vadd.f32 %v120, %v130
    %v134 = vxor.u32 %v132, 2147483648
    %v135 = vxor.u32 %v133, 2147483648
    %v136 = vmul.f32 %v134, 1.442695
    %v137 = vpow.pop %v136
    %v138 = vmul.f32 %v135, 1.442695
    %v139 = vpow.pop %v138
    %v140 = vadd.f32 %v137, 1.0
    %v141 = vadd.f32 %v139, 1.0
    %v142 = vrcp.pop %v140
    %v143 = vmul.f32 1.0, %v142
    %v144 = vrcp.pop %v141
    %v145 = vmul.f32 1.0, %v144
    %v146 = vtanh.pop %v115
    %v147 = vtanh.pop %v120
    %v148 = vld [vmem:[%s2] sm:$0xff]
    %v149 = vld [vmem:[%s2 + $0x8] sm:$0xff]
    %v150 = vld [vmem:[%s2 + $0x10] sm:$0xff]
    %v151 = vld [vmem:[%s2 + $0x18] sm:$0xff]
    %v153 = vsel %vm41, %v146, 0
    %v156 = vsel %vm41, %v147, 0
    %158 = vmatprep.subr.mxu0 0.0
    %159 = vmatpush1.msra.mxu0 %v148
    %160 = vmatprep.subr.mxu0 0.0
    %161 = vmatpush1.msra.mxu0 %v149
    %162 = vmatprep.subr.mxu0 0.0
    %163 = vmatpush1.msra.mxu0 %v150
    %164 = vmatprep.subr.mxu0 0.0
    %165 = vmatpush1.msra.mxu0 %v151
    %166 = vmatprep.subr.mxu0 0.0
    %167 = vmatpush1.msra.mxu0 0.0
    %168 = vmatprep.subr.mxu0 0.0
    %169 = vmatpush1.msra.mxu0 0.0
    %170 = vmatprep.subr.mxu0 0.0
    %171 = vmatpush1.msra.mxu0 0.0
    %172 = vmatprep.subr.mxu0 0.0
    %173 = vmatpush1.msra.mxu0 0.0
    %174 = vmatprep.subr.mxu0 0.0
    %175 = vmatpush1.msra.mxu0 0.0
    %176 = vmatprep.subr.mxu0 0.0
    %177 = vmatpush1.msra.mxu0 0.0
    %178 = vmatprep.subr.mxu0 0.0
    %179 = vmatpush1.msra.mxu0 0.0
    %180 = vmatprep.subr.mxu0 0.0
    %181 = vmatpush1.msra.mxu0 0.0
    %182 = vmatprep.subr.mxu0 0.0
    %183 = vmatpush1.msra.mxu0 0.0
    %184 = vmatprep.subr.mxu0 0.0
    %185 = vmatpush1.msra.mxu0 0.0
    %186 = vmatprep.subr.mxu0 0.0
    %187 = vmatpush1.msra.mxu0 0.0
    %188 = vmatprep.subr.mxu0 0.0
    %189 = vmatpush1.msra.mxu0 0.0
    %190 = vmatprep.subr.mxu0 0.0
    %191 = vmatpush1.msra.mxu0 0.0
    %192 = vmatprep.subr.mxu0 0.0
    %193 = vmatpush1.msra.mxu0 0.0
    %194 = vmatprep.subr.mxu0 0.0
    %195 = vmatpush1.msra.mxu0 0.0
    %196 = vmatprep.subr.mxu0 0.0
    %197 = vmatpush1.msra.mxu0 0.0
    %198 = vmatprep.subr.mxu0 0.0
    %199 = vmatpush1.msra.mxu0 0.0
    %200 = vmatprep.subr.mxu0 0.0
    %201 = vmatpush1.msra.mxu0 0.0
    %202 = vmatprep.subr.mxu0 0.0
    %203 = vmatpush1.msra.mxu0 0.0
    %204 = vmatprep.subr.mxu0 0.0
    %205 = vmatpush1.msra.mxu0 0.0
    %206 = vmatprep.subr.mxu0 0.0
    %207 = vmatpush1.msra.mxu0 0.0
    %208 = vmatprep.subr.mxu0 0.0
    %209 = vmatpush1.msra.mxu0 0.0
    %210 = vmatprep.subr.mxu0 0.0
    %211 = vmatpush1.msra.mxu0 0.0
    %212 = vmatprep.subr.mxu0 0.0
    %213 = vmatpush1.msra.mxu0 0.0
    %214 = vmatprep.subr.mxu0 0.0
    %215 = vmatpush1.msra.mxu0 0.0
    %216 = vmatprep.subr.mxu0 0.0
    %217 = vmatpush1.msra.mxu0 0.0
    %218 = vmatprep.subr.mxu0 0.0
    %219 = vmatpush1.msra.mxu0 0.0
    %220 = vmatprep.subr.mxu0 0.0
    %221 = vmatpush1.msra.mxu0 0.0
    %222 = vmatprep.mubr.f32.mxu0 0.0
    %223 = vmatmul.mubr.f32.gmra.mrb[0].mxu0 %v153
    %v224 = vpop.f32.mrb[0].mxu0
    %v225 = vadd.f32 0.0, %v224
    %v226 = vpop.f32.mrb[0].mxu0
    %227 = vmatprep.mubr.f32.mxu0 0.0
    %228 = vmatmul.mubr.f32.gmra.mrb[0].mxu0 %v156
    %v229 = vpop.f32.mrb[0].mxu0
    %v230 = vadd.f32 0.0, %v229
    %v231 = vpop.f32.mrb[0].mxu0
    %232 = vdwg.mxu0
    %233 = vxpose.xlu0.b32.start [1/16] %v225, 128
    %234 = vxpose.xlu0.b32.cont [2/16] 0.0, 128
    %235 = vxpose.xlu0.b32.cont [3/16] 0.0, 128
    %236 = vxpose.xlu0.b32.cont [4/16] 0.0, 128
    %237 = vxpose.xlu0.b32.cont [5/16] 0.0, 128
    %238 = vxpose.xlu0.b32.cont [6/16] 0.0, 128
    %239 = vxpose.xlu0.b32.cont [7/16] 0.0, 128
    %240 = vxpose.xlu0.b32.cont [8/16] 0.0, 128
    %241 = vxpose.xlu0.b32.cont [9/16] 0.0, 128
    %242 = vxpose.xlu0.b32.cont [10/16] 0.0, 128
    %243 = vxpose.xlu0.b32.cont [11/16] 0.0, 128
    %244 = vxpose.xlu0.b32.cont [12/16] 0.0, 128
    %245 = vxpose.xlu0.b32.cont [13/16] 0.0, 128
    %246 = vxpose.xlu0.b32.cont [14/16] 0.0, 128
    %247 = vxpose.xlu0.b32.cont [15/16] 0.0, 128
    %248 = vxpose.xlu0.b32.end [16/16] 0.0, 128
    %v249 = vpop.trf.xlu0
    %v250 = vpop.trf.xlu0
    %v251 = vpop.trf.xlu0
    %v252 = vpop.trf.xlu0
    %v253 = vpop.trf.xlu0
    %v254 = vpop.trf.xlu0
    %v255 = vpop.trf.xlu0
    %v256 = vpop.trf.xlu0
    %v257 = vpop.trf.xlu0
    %v258 = vpop.trf.xlu0
    %v259 = vpop.trf.xlu0
    %v260 = vpop.trf.xlu0
    %v261 = vpop.trf.xlu0
    %v262 = vpop.trf.xlu0
    %v263 = vpop.trf.xlu0
    %v264 = vpop.trf.xlu0
    %266 = vset.pattern.permute.xlu0 0
    %267 = vperm.xlu0 %266, %v225
    %v268 = vpop.permute.xlu0 %267
    %v270 = vlaneseq
    %v271 = vshrl.u32 %v270, 7
    %v272 = vsub.s32 4, %v271
    %v273 = vrot.slane %v249, %v272
    %v274 = vadd.f32 %v268, %v273
    %vm275 = vcmp.gt.f32.partialorder %v274, 0.0
    %v276 = vmul.f32 %v274, 0.2
    %v277 = vsel %vm275, %v274, %v276
    %vm278 = vcmask 64512
    %v279 = vsel %vm278, %v277, -inf
    %280 = vmax.xlane.f32.xlu0 %v279
    %v281 = vpop.xlane.xlu0 %280
    %v282 = vsub.f32 %v277, %v281
    %v283 = vmul.f32 %v282, 1.442695
    %v284 = vpow.pop %v283
    %v285 = vsel %vm278, %v284, 0.0
    %286 = vadd.xlane.f32.xlu0 %v285
    %v287 = vpop.xlane.xlu0 %286
    %v289 = vsel %vm278, %v284, 0
    %291 = vmatprep.subr.mxu0 0.0
    %292 = vmatpush1.msra.mxu0 %v115
    %293 = vmatprep.subr.mxu0 0.0
    %294 = vmatpush1.msra.mxu0 0.0
    %295 = vmatprep.subr.mxu0 0.0
    %296 = vmatpush1.msra.mxu0 0.0
    %297 = vmatprep.subr.mxu0 0.0
    %298 = vmatpush1.msra.mxu0 0.0
    %299 = vmatprep.subr.mxu0 0.0
    %300 = vmatpush1.msra.mxu0 0.0
    %301 = vmatprep.subr.mxu0 0.0
    %302 = vmatpush1.msra.mxu0 0.0
    %303 = vmatprep.subr.mxu0 0.0
    %304 = vmatpush1.msra.mxu0 0.0
    %305 = vmatprep.subr.mxu0 0.0
    %306 = vmatpush1.msra.mxu0 0.0
    %307 = vmatprep.subr.mxu0 0.0
    %308 = vmatpush1.msra.mxu0 0.0
    %309 = vmatprep.subr.mxu0 0.0
    %310 = vmatpush1.msra.mxu0 0.0
    %311 = vmatprep.subr.mxu0 0.0
    %312 = vmatpush1.msra.mxu0 0.0
    %313 = vmatprep.subr.mxu0 0.0
    %314 = vmatpush1.msra.mxu0 0.0
    %315 = vmatprep.subr.mxu0 0.0
    %316 = vmatpush1.msra.mxu0 0.0
    %317 = vmatprep.subr.mxu0 0.0
    %318 = vmatpush1.msra.mxu0 0.0
    %319 = vmatprep.subr.mxu0 0.0
    %320 = vmatpush1.msra.mxu0 0.0
    %321 = vmatprep.subr.mxu0 0.0
    %322 = vmatpush1.msra.mxu0 0.0
    %323 = vmatprep.subr.mxu0 0.0
    %324 = vmatpush1.msra.mxu0 0.0
    %325 = vmatprep.subr.mxu0 0.0
    %326 = vmatpush1.msra.mxu0 0.0
    %327 = vmatprep.subr.mxu0 0.0
    %328 = vmatpush1.msra.mxu0 0.0
    %329 = vmatprep.subr.mxu0 0.0
    %330 = vmatpush1.msra.mxu0 0.0
    %331 = vmatprep.subr.mxu0 0.0
    %332 = vmatpush1.msra.mxu0 0.0
    %333 = vmatprep.subr.mxu0 0.0
    %334 = vmatpush1.msra.mxu0 0.0
    %335 = vmatprep.subr.mxu0 0.0
    %336 = vmatpush1.msra.mxu0 0.0
    %337 = vmatprep.subr.mxu0 0.0
    %338 = vmatpush1.msra.mxu0 0.0
    %339 = vmatprep.subr.mxu0 0.0
    %340 = vmatpush1.msra.mxu0 0.0
    %341 = vmatprep.subr.mxu0 0.0
    %342 = vmatpush1.msra.mxu0 0.0
    %343 = vmatprep.subr.mxu0 0.0
    %344 = vmatpush1.msra.mxu0 0.0
    %345 = vmatprep.subr.mxu0 0.0
    %346 = vmatpush1.msra.mxu0 0.0
    %347 = vmatprep.subr.mxu0 0.0
    %348 = vmatpush1.msra.mxu0 0.0
    %349 = vmatprep.subr.mxu0 0.0
    %350 = vmatpush1.msra.mxu0 0.0
    %351 = vmatprep.subr.mxu0 0.0
    %352 = vmatpush1.msra.mxu0 0.0
    %353 = vmatprep.subr.mxu0 0.0
    %354 = vmatpush1.msra.mxu0 0.0
    %355 = vmatprep.mubr.f32.mxu0 0.0
    %356 = vmatmul.mubr.f32.gmra.mrb[0].mxu0 %v289
    %v357 = vpop.f32.mrb[0].mxu0
    %v358 = vadd.f32 0.0, %v357
    %v359 = vpop.f32.mrb[0].mxu0
    %360 = vdwg.mxu0
    %v361 = vrcp.pop %v287
    %v362 = vmul.f32 %v358, %v361
    %363 = vset.pattern.permute.xlu0 1
    %364 = vperm.xlu0 %363, %v225
    %v365 = vpop.permute.xlu0 %364
    %v367 = vlaneseq
    %v368 = vshrl.u32 %v367, 7
    %v369 = vsub.s32 5, %v368
    %v370 = vrot.slane %v249, %v369
    %v371 = vadd.f32 %v365, %v370
    %vm372 = vcmp.gt.f32.partialorder %v371, 0.0
    %v373 = vmul.f32 %v371, 0.2
    %v374 = vsel %vm372, %v371, %v373
    %v375 = vsel %vm278, %v374, -inf
    %376 = vmax.xlane.f32.xlu0 %v375
    %v377 = vpop.xlane.xlu0 %376
    %v378 = vsub.f32 %v374, %v377
    %v379 = vmul.f32 %v378, 1.442695
    %v380 = vpow.pop %v379
    %v381 = vsel %vm278, %v380, 0.0
    %382 = vadd.xlane.f32.xlu0 %v381
    %v383 = vpop.xlane.xlu0 %382
    %385 = vrot.lane.b32.xlu0 %v115, 120
    %v386 = vpop.permute.xlu0 %385
    %v389 = vsel %vm278, %v380, 0
    %391 = vmatprep.subr.mxu0 0.0
    %392 = vmatpush1.msra.mxu0 %v386
    %393 = vmatprep.subr.mxu0 0.0
    %394 = vmatpush1.msra.mxu0 0.0
    %395 = vmatprep.subr.mxu0 0.0
    %396 = vmatpush1.msra.mxu0 0.0
    %397 = vmatprep.subr.mxu0 0.0
    %398 = vmatpush1.msra.mxu0 0.0
    %399 = vmatprep.subr.mxu0 0.0
    %400 = vmatpush1.msra.mxu0 0.0
    %401 = vmatprep.subr.mxu0 0.0
    %402 = vmatpush1.msra.mxu0 0.0
    %403 = vmatprep.subr.mxu0 0.0
    %404 = vmatpush1.msra.mxu0 0.0
    %405 = vmatprep.subr.mxu0 0.0
    %406 = vmatpush1.msra.mxu0 0.0
    %407 = vmatprep.subr.mxu0 0.0
    %408 = vmatpush1.msra.mxu0 0.0
    %409 = vmatprep.subr.mxu0 0.0
    %410 = vmatpush1.msra.mxu0 0.0
    %411 = vmatprep.subr.mxu0 0.0
    %412 = vmatpush1.msra.mxu0 0.0
    %413 = vmatprep.subr.mxu0 0.0
    %414 = vmatpush1.msra.mxu0 0.0
    %415 = vmatprep.subr.mxu0 0.0
    %416 = vmatpush1.msra.mxu0 0.0
    %417 = vmatprep.subr.mxu0 0.0
    %418 = vmatpush1.msra.mxu0 0.0
    %419 = vmatprep.subr.mxu0 0.0
    %420 = vmatpush1.msra.mxu0 0.0
    %421 = vmatprep.subr.mxu0 0.0
    %422 = vmatpush1.msra.mxu0 0.0
    %423 = vmatprep.subr.mxu0 0.0
    %424 = vmatpush1.msra.mxu0 0.0
    %425 = vmatprep.subr.mxu0 0.0
    %426 = vmatpush1.msra.mxu0 0.0
    %427 = vmatprep.subr.mxu0 0.0
    %428 = vmatpush1.msra.mxu0 0.0
    %429 = vmatprep.subr.mxu0 0.0
    %430 = vmatpush1.msra.mxu0 0.0
    %431 = vmatprep.subr.mxu0 0.0
    %432 = vmatpush1.msra.mxu0 0.0
    %433 = vmatprep.subr.mxu0 0.0
    %434 = vmatpush1.msra.mxu0 0.0
    %435 = vmatprep.subr.mxu0 0.0
    %436 = vmatpush1.msra.mxu0 0.0
    %437 = vmatprep.subr.mxu0 0.0
    %438 = vmatpush1.msra.mxu0 0.0
    %439 = vmatprep.subr.mxu0 0.0
    %440 = vmatpush1.msra.mxu0 0.0
    %441 = vmatprep.subr.mxu0 0.0
    %442 = vmatpush1.msra.mxu0 0.0
    %443 = vmatprep.subr.mxu0 0.0
    %444 = vmatpush1.msra.mxu0 0.0
    %445 = vmatprep.subr.mxu0 0.0
    %446 = vmatpush1.msra.mxu0 0.0
    %447 = vmatprep.subr.mxu0 0.0
    %448 = vmatpush1.msra.mxu0 0.0
    %449 = vmatprep.subr.mxu0 0.0
    %450 = vmatpush1.msra.mxu0 0.0
    %451 = vmatprep.subr.mxu0 0.0
    %452 = vmatpush1.msra.mxu0 0.0
    %453 = vmatprep.subr.mxu0 0.0
    %454 = vmatpush1.msra.mxu0 0.0
    %455 = vmatprep.mubr.f32.mxu0 0.0
    %456 = vmatmul.mubr.f32.gmra.mrb[0].mxu0 %v389
    %v457 = vpop.f32.mrb[0].mxu0
    %v458 = vadd.f32 0.0, %v457
    %v459 = vpop.f32.mrb[0].mxu0
    %460 = vdwg.mxu0
    %v461 = vrcp.pop %v383
    %v462 = vmul.f32 %v458, %v461
    %463 = vset.pattern.permute.xlu0 2
    %464 = vperm.xlu0 %463, %v225
    %v465 = vpop.permute.xlu0 %464
    %v467 = vlaneseq
    %v468 = vshrl.u32 %v467, 7
    %v469 = vsub.s32 6, %v468
    %v470 = vrot.slane %v249, %v469
    %v471 = vadd.f32 %v465, %v470
    %vm472 = vcmp.gt.f32.partialorder %v471, 0.0
    %v473 = vmul.f32 %v471, 0.2
    %v474 = vsel %vm472, %v471, %v473
    %v475 = vsel %vm278, %v474, -inf
    %476 = vmax.xlane.f32.xlu0 %v475
    %v477 = vpop.xlane.xlu0 %476
    %v478 = vsub.f32 %v474, %v477
    %v479 = vmul.f32 %v478, 1.442695
    %v480 = vpow.pop %v479
    %v481 = vsel %vm278, %v480, 0.0
    %482 = vadd.xlane.f32.xlu0 %v481
    %v483 = vpop.xlane.xlu0 %482
    %484 = vrot.lane.b32.xlu0 %v115, 112
    %v485 = vpop.permute.xlu0 %484
    %v488 = vsel %vm278, %v480, 0
    %490 = vmatprep.subr.mxu0 0.0
    %491 = vmatpush1.msra.mxu0 %v485
    %492 = vmatprep.subr.mxu0 0.0
    %493 = vmatpush1.msra.mxu0 0.0
    %494 = vmatprep.subr.mxu0 0.0
    %495 = vmatpush1.msra.mxu0 0.0
    %496 = vmatprep.subr.mxu0 0.0
    %497 = vmatpush1.msra.mxu0 0.0
    %498 = vmatprep.subr.mxu0 0.0
    %499 = vmatpush1.msra.mxu0 0.0
    %500 = vmatprep.subr.mxu0 0.0
    %501 = vmatpush1.msra.mxu0 0.0
    %502 = vmatprep.subr.mxu0 0.0
    %503 = vmatpush1.msra.mxu0 0.0
    %504 = vmatprep.subr.mxu0 0.0
    %505 = vmatpush1.msra.mxu0 0.0
    %506 = vmatprep.subr.mxu0 0.0
    %507 = vmatpush1.msra.mxu0 0.0
    %508 = vmatprep.subr.mxu0 0.0
    %509 = vmatpush1.msra.mxu0 0.0
    %510 = vmatprep.subr.mxu0 0.0
    %511 = vmatpush1.msra.mxu0 0.0
    %512 = vmatprep.subr.mxu0 0.0
    %513 = vmatpush1.msra.mxu0 0.0
    %514 = vmatprep.subr.mxu0 0.0
    %515 = vmatpush1.msra.mxu0 0.0
    %516 = vmatprep.subr.mxu0 0.0
    %517 = vmatpush1.msra.mxu0 0.0
    %518 = vmatprep.subr.mxu0 0.0
    %519 = vmatpush1.msra.mxu0 0.0
    %520 = vmatprep.subr.mxu0 0.0
    %521 = vmatpush1.msra.mxu0 0.0
    %522 = vmatprep.subr.mxu0 0.0
    %523 = vmatpush1.msra.mxu0 0.0
    %524 = vmatprep.subr.mxu0 0.0
    %525 = vmatpush1.msra.mxu0 0.0
    %526 = vmatprep.subr.mxu0 0.0
    %527 = vmatpush1.msra.mxu0 0.0
    %528 = vmatprep.subr.mxu0 0.0
    %529 = vmatpush1.msra.mxu0 0.0
    %530 = vmatprep.subr.mxu0 0.0
    %531 = vmatpush1.msra.mxu0 0.0
    %532 = vmatprep.subr.mxu0 0.0
    %533 = vmatpush1.msra.mxu0 0.0
    %534 = vmatprep.subr.mxu0 0.0
    %535 = vmatpush1.msra.mxu0 0.0
    %536 = vmatprep.subr.mxu0 0.0
    %537 = vmatpush1.msra.mxu0 0.0
    %538 = vmatprep.subr.mxu0 0.0
    %539 = vmatpush1.msra.mxu0 0.0
    %540 = vmatprep.subr.mxu0 0.0
    %541 = vmatpush1.msra.mxu0 0.0
    %542 = vmatprep.subr.mxu0 0.0
    %543 = vmatpush1.msra.mxu0 0.0
    %544 = vmatprep.subr.mxu0 0.0
    %545 = vmatpush1.msra.mxu0 0.0
    %546 = vmatprep.subr.mxu0 0.0
    %547 = vmatpush1.msra.mxu0 0.0
    %548 = vmatprep.subr.mxu0 0.0
    %549 = vmatpush1.msra.mxu0 0.0
    %550 = vmatprep.subr.mxu0 0.0
    %551 = vmatpush1.msra.mxu0 0.0
    %552 = vmatprep.subr.mxu0 0.0
    %553 = vmatpush1.msra.mxu0 0.0
    %554 = vmatprep.mubr.f32.mxu0 0.0
    %555 = vmatmul.mubr.f32.gmra.mrb[0].mxu0 %v488
    %v556 = vpop.f32.mrb[0].mxu0
    %v557 = vadd.f32 0.0, %v556
    %v558 = vpop.f32.mrb[0].mxu0
    %559 = vdwg.mxu0
    %v560 = vrcp.pop %v483
    %v561 = vmul.f32 %v557, %v560
    %562 = vset.pattern.permute.xlu0 3
    %563 = vperm.xlu0 %562, %v225
    %v564 = vpop.permute.xlu0 %563
    %v566 = vlaneseq
    %v567 = vshrl.u32 %v566, 7
    %v568 = vsub.s32 7, %v567
    %v569 = vrot.slane %v249, %v568
    %v570 = vadd.f32 %v564, %v569
    %vm571 = vcmp.gt.f32.partialorder %v570, 0.0
    %v572 = vmul.f32 %v570, 0.2
    %v573 = vsel %vm571, %v570, %v572
    %v574 = vsel %vm278, %v573, -inf
    %575 = vmax.xlane.f32.xlu0 %v574
    %v576 = vpop.xlane.xlu0 %575
    %v577 = vsub.f32 %v573, %v576
    %v578 = vmul.f32 %v577, 1.442695
    %v579 = vpow.pop %v578
    %v580 = vsel %vm278, %v579, 0.0
    %581 = vadd.xlane.f32.xlu0 %v580
    %v582 = vpop.xlane.xlu0 %581
    %583 = vrot.lane.b32.xlu0 %v115, 104
    %v584 = vpop.permute.xlu0 %583
    %v587 = vsel %vm278, %v579, 0
    %589 = vmatprep.subr.mxu0 0.0
    %590 = vmatpush1.msra.mxu0 %v584
    %591 = vmatprep.subr.mxu0 0.0
    %592 = vmatpush1.msra.mxu0 0.0
    %593 = vmatprep.subr.mxu0 0.0
    %594 = vmatpush1.msra.mxu0 0.0
    %595 = vmatprep.subr.mxu0 0.0
    %596 = vmatpush1.msra.mxu0 0.0
    %597 = vmatprep.subr.mxu0 0.0
    %598 = vmatpush1.msra.mxu0 0.0
    %599 = vmatprep.subr.mxu0 0.0
    %600 = vmatpush1.msra.mxu0 0.0
    %601 = vmatprep.subr.mxu0 0.0
    %602 = vmatpush1.msra.mxu0 0.0
    %603 = vmatprep.subr.mxu0 0.0
    %604 = vmatpush1.msra.mxu0 0.0
    %605 = vmatprep.subr.mxu0 0.0
    %606 = vmatpush1.msra.mxu0 0.0
    %607 = vmatprep.subr.mxu0 0.0
    %608 = vmatpush1.msra.mxu0 0.0
    %609 = vmatprep.subr.mxu0 0.0
    %610 = vmatpush1.msra.mxu0 0.0
    %611 = vmatprep.subr.mxu0 0.0
    %612 = vmatpush1.msra.mxu0 0.0
    %613 = vmatprep.subr.mxu0 0.0
    %614 = vmatpush1.msra.mxu0 0.0
    %615 = vmatprep.subr.mxu0 0.0
    %616 = vmatpush1.msra.mxu0 0.0
    %617 = vmatprep.subr.mxu0 0.0
    %618 = vmatpush1.msra.mxu0 0.0
    %619 = vmatprep.subr.mxu0 0.0
    %620 = vmatpush1.msra.mxu0 0.0
    %621 = vmatprep.subr.mxu0 0.0
    %622 = vmatpush1.msra.mxu0 0.0
    %623 = vmatprep.subr.mxu0 0.0
    %624 = vmatpush1.msra.mxu0 0.0
    %625 = vmatprep.subr.mxu0 0.0
    %626 = vmatpush1.msra.mxu0 0.0
    %627 = vmatprep.subr.mxu0 0.0
    %628 = vmatpush1.msra.mxu0 0.0
    %629 = vmatprep.subr.mxu0 0.0
    %630 = vmatpush1.msra.mxu0 0.0
    %631 = vmatprep.subr.mxu0 0.0
    %632 = vmatpush1.msra.mxu0 0.0
    %633 = vmatprep.subr.mxu0 0.0
    %634 = vmatpush1.msra.mxu0 0.0
    %635 = vmatprep.subr.mxu0 0.0
    %636 = vmatpush1.msra.mxu0 0.0
    %637 = vmatprep.subr.mxu0 0.0
    %638 = vmatpush1.msra.mxu0 0.0
    %639 = vmatprep.subr.mxu0 0.0
    %640 = vmatpush1.msra.mxu0 0.0
    %641 = vmatprep.subr.mxu0 0.0
    %642 = vmatpush1.msra.mxu0 0.0
    %643 = vmatprep.subr.mxu0 0.0
    %644 = vmatpush1.msra.mxu0 0.0
    %645 = vmatprep.subr.mxu0 0.0
    %646 = vmatpush1.msra.mxu0 0.0
    %647 = vmatprep.subr.mxu0 0.0
    %648 = vmatpush1.msra.mxu0 0.0
    %649 = vmatprep.subr.mxu0 0.0
    %650 = vmatpush1.msra.mxu0 0.0
    %651 = vmatprep.subr.mxu0 0.0
    %652 = vmatpush1.msra.mxu0 0.0
    %653 = vmatprep.mubr.f32.mxu0 0.0
    %654 = vmatmul.mubr.f32.gmra.mrb[0].mxu0 %v587
    %v655 = vpop.f32.mrb[0].mxu0
    %v656 = vadd.f32 0.0, %v655
    %v657 = vpop.f32.mrb[0].mxu0
    %658 = vdwg.mxu0
    %v659 = vrcp.pop %v582
    %v660 = vmul.f32 %v656, %v659
    %662 = vrot.lane.b32.xlu0 %v462, 8
    %v663 = vpop.permute.xlu0 %662
    %666 = vrot.lane.b32.xlu0 %v561, 16
    %v667 = vpop.permute.xlu0 %666
    %670 = vrot.lane.b32.xlu0 %v660, 24
    %v671 = vpop.permute.xlu0 %670
    %v673 = vsel %vm278, %v362, %v663
    %vm674 = vcmask 130048
    %v675 = vsel %vm674, %v673, %v667
    %vm676 = vcmask 195584
    %v677 = vsel %vm676, %v675, %v671
    %v678 = vld [vmem:[%s3] sm:$0x1]
    %v680 = vlaneseq
    %v681 = vshrl.u32 %v680, 7
    %v682 = vsub.s32 0, %v681
    %v683 = vrot.slane %v678, %v682
    %v685 = vadd.f32 %v677, %v683
    %vm686 = vcmp.gt.f32.partialorder %v685, 0.0
    %v687 = vmin.f32 %v685, 0.0
    %v688 = vmul.f32 %v687, 1.442695
    %v689 = vpow.pop %v688
    %v690 = vsub.f32 %v689, 1.0
    %v691 = vsel %vm686, %v685, %v690
    %693 = vrot.lane.b32.xlu0 %v691, 32
    %v694 = vpop.permute.xlu0 %693
    %v696 = vmul.f32 %v143, %v694
    %v697 = vsub.f32 1.0, %v143
    %698 = vrot.lane.b32.xlu0 %v35, 32
    %v699 = vpop.permute.xlu0 %698
    %v701 = vmul.f32 %v697, %v699
    %v702 = vadd.f32 %v696, %v701
    %704 = vrot.lane.b32.xlu0 %v702, 96
    %v705 = vpop.permute.xlu0 %704
    %707 = vst.msk [vmem:[#allocation5] sm:$0xff] %vm41, %v705
    %708 = vxpose.xlu0.b32.start [1/16] %v230, 128
    %709 = vxpose.xlu0.b32.cont [2/16] 0.0, 128
    %710 = vxpose.xlu0.b32.cont [3/16] 0.0, 128
    %711 = vxpose.xlu0.b32.cont [4/16] 0.0, 128
    %712 = vxpose.xlu0.b32.cont [5/16] 0.0, 128
    %713 = vxpose.xlu0.b32.cont [6/16] 0.0, 128
    %714 = vxpose.xlu0.b32.cont [7/16] 0.0, 128
    %715 = vxpose.xlu0.b32.cont [8/16] 0.0, 128
    %716 = vxpose.xlu0.b32.cont [9/16] 0.0, 128
    %717 = vxpose.xlu0.b32.cont [10/16] 0.0, 128
    %718 = vxpose.xlu0.b32.cont [11/16] 0.0, 128
    %719 = vxpose.xlu0.b32.cont [12/16] 0.0, 128
    %720 = vxpose.xlu0.b32.cont [13/16] 0.0, 128
    %721 = vxpose.xlu0.b32.cont [14/16] 0.0, 128
    %722 = vxpose.xlu0.b32.cont [15/16] 0.0, 128
    %723 = vxpose.xlu0.b32.end [16/16] 0.0, 128
    %v724 = vpop.trf.xlu0
    %v725 = vpop.trf.xlu0
    %v726 = vpop.trf.xlu0
    %v727 = vpop.trf.xlu0
    %v728 = vpop.trf.xlu0
    %v729 = vpop.trf.xlu0
    %v730 = vpop.trf.xlu0
    %v731 = vpop.trf.xlu0
    %v732 = vpop.trf.xlu0
    %v733 = vpop.trf.xlu0
    %v734 = vpop.trf.xlu0
    %v735 = vpop.trf.xlu0
    %v736 = vpop.trf.xlu0
    %v737 = vpop.trf.xlu0
    %v738 = vpop.trf.xlu0
    %v739 = vpop.trf.xlu0
    %741 = vset.pattern.permute.xlu0 0
    %742 = vperm.xlu0 %741, %v230
    %v743 = vpop.permute.xlu0 %742
    %v745 = vlaneseq
    %v746 = vshrl.u32 %v745, 7
    %v747 = vsub.s32 4, %v746
    %v748 = vrot.slane %v724, %v747
    %v749 = vadd.f32 %v743, %v748
    %vm750 = vcmp.gt.f32.partialorder %v749, 0.0
    %v751 = vmul.f32 %v749, 0.2
    %v752 = vsel %vm750, %v749, %v751
    %v753 = vsel %vm278, %v752, -inf
    %754 = vmax.xlane.f32.xlu0 %v753
    %v755 = vpop.xlane.xlu0 %754
    %v756 = vsub.f32 %v752, %v755
    %v757 = vmul.f32 %v756, 1.442695
    %v758 = vpow.pop %v757
    %v759 = vsel %vm278, %v758, 0.0
    %760 = vadd.xlane.f32.xlu0 %v759
    %v761 = vpop.xlane.xlu0 %760
    %v763 = vsel %vm278, %v758, 0
    %765 = vmatprep.subr.mxu0 0.0
    %766 = vmatpush1.msra.mxu0 %v120
    %767 = vmatprep.subr.mxu0 0.0
    %768 = vmatpush1.msra.mxu0 0.0
    %769 = vmatprep.subr.mxu0 0.0
    %770 = vmatpush1.msra.mxu0 0.0
    %771 = vmatprep.subr.mxu0 0.0
    %772 = vmatpush1.msra.mxu0 0.0
    %773 = vmatprep.subr.mxu0 0.0
    %774 = vmatpush1.msra.mxu0 0.0
    %775 = vmatprep.subr.mxu0 0.0
    %776 = vmatpush1.msra.mxu0 0.0
    %777 = vmatprep.subr.mxu0 0.0
    %778 = vmatpush1.msra.mxu0 0.0
    %779 = vmatprep.subr.mxu0 0.0
    %780 = vmatpush1.msra.mxu0 0.0
    %781 = vmatprep.subr.mxu0 0.0
    %782 = vmatpush1.msra.mxu0 0.0
    %783 = vmatprep.subr.mxu0 0.0
    %784 = vmatpush1.msra.mxu0 0.0
    %785 = vmatprep.subr.mxu0 0.0
    %786 = vmatpush1.msra.mxu0 0.0
    %787 = vmatprep.subr.mxu0 0.0
    %788 = vmatpush1.msra.mxu0 0.0
    %789 = vmatprep.subr.mxu0 0.0
    %790 = vmatpush1.msra.mxu0 0.0
    %791 = vmatprep.subr.mxu0 0.0
    %792 = vmatpush1.msra.mxu0 0.0
    %793 = vmatprep.subr.mxu0 0.0
    %794 = vmatpush1.msra.mxu0 0.0
    %795 = vmatprep.subr.mxu0 0.0
    %796 = vmatpush1.msra.mxu0 0.0
    %797 = vmatprep.subr.mxu0 0.0
    %798 = vmatpush1.msra.mxu0 0.0
    %799 = vmatprep.subr.mxu0 0.0
    %800 = vmatpush1.msra.mxu0 0.0
    %801 = vmatprep.subr.mxu0 0.0
    %802 = vmatpush1.msra.mxu0 0.0
    %803 = vmatprep.subr.mxu0 0.0
    %804 = vmatpush1.msra.mxu0 0.0
    %805 = vmatprep.subr.mxu0 0.0
    %806 = vmatpush1.msra.mxu0 0.0
    %807 = vmatprep.subr.mxu0 0.0
    %808 = vmatpush1.msra.mxu0 0.0
    %809 = vmatprep.subr.mxu0 0.0
    %810 = vmatpush1.msra.mxu0 0.0
    %811 = vmatprep.subr.mxu0 0.0
    %812 = vmatpush1.msra.mxu0 0.0
    %813 = vmatprep.subr.mxu0 0.0
    %814 = vmatpush1.msra.mxu0 0.0
    %815 = vmatprep.subr.mxu0 0.0
    %816 = vmatpush1.msra.mxu0 0.0
    %817 = vmatprep.subr.mxu0 0.0
    %818 = vmatpush1.msra.mxu0 0.0
    %819 = vmatprep.subr.mxu0 0.0
    %820 = vmatpush1.msra.mxu0 0.0
    %821 = vmatprep.subr.mxu0 0.0
    %822 = vmatpush1.msra.mxu0 0.0
    %823 = vmatprep.subr.mxu0 0.0
    %824 = vmatpush1.msra.mxu0 0.0
    %825 = vmatprep.subr.mxu0 0.0
    %826 = vmatpush1.msra.mxu0 0.0
    %827 = vmatprep.subr.mxu0 0.0
    %828 = vmatpush1.msra.mxu0 0.0
    %829 = vmatprep.mubr.f32.mxu0 0.0
    %830 = vmatmul.mubr.f32.gmra.mrb[0].mxu0 %v763
    %v831 = vpop.f32.mrb[0].mxu0
    %v832 = vadd.f32 0.0, %v831
    %v833 = vpop.f32.mrb[0].mxu0
    %834 = vdwg.mxu0
    %v835 = vrcp.pop %v761
    %v836 = vmul.f32 %v832, %v835
    %837 = vset.pattern.permute.xlu0 1
    %838 = vperm.xlu0 %837, %v230
    %v839 = vpop.permute.xlu0 %838
    %v841 = vlaneseq
    %v842 = vshrl.u32 %v841, 7
    %v843 = vsub.s32 5, %v842
    %v844 = vrot.slane %v724, %v843
    %v845 = vadd.f32 %v839, %v844
    %vm846 = vcmp.gt.f32.partialorder %v845, 0.0
    %v847 = vmul.f32 %v845, 0.2
    %v848 = vsel %vm846, %v845, %v847
    %v849 = vsel %vm278, %v848, -inf
    %850 = vmax.xlane.f32.xlu0 %v849
    %v851 = vpop.xlane.xlu0 %850
    %v852 = vsub.f32 %v848, %v851
    %v853 = vmul.f32 %v852, 1.442695
    %v854 = vpow.pop %v853
    %v855 = vsel %vm278, %v854, 0.0
    %856 = vadd.xlane.f32.xlu0 %v855
    %v857 = vpop.xlane.xlu0 %856
    %859 = vrot.lane.b32.xlu0 %v120, 120
    %v860 = vpop.permute.xlu0 %859
    %v863 = vsel %vm278, %v854, 0
    %865 = vmatprep.subr.mxu0 0.0
    %866 = vmatpush1.msra.mxu0 %v860
    %867 = vmatprep.subr.mxu0 0.0
    %868 = vmatpush1.msra.mxu0 0.0
    %869 = vmatprep.subr.mxu0 0.0
    %870 = vmatpush1.msra.mxu0 0.0
    %871 = vmatprep.subr.mxu0 0.0
    %872 = vmatpush1.msra.mxu0 0.0
    %873 = vmatprep.subr.mxu0 0.0
    %874 = vmatpush1.msra.mxu0 0.0
    %875 = vmatprep.subr.mxu0 0.0
    %876 = vmatpush1.msra.mxu0 0.0
    %877 = vmatprep.subr.mxu0 0.0
    %878 = vmatpush1.msra.mxu0 0.0
    %879 = vmatprep.subr.mxu0 0.0
    %880 = vmatpush1.msra.mxu0 0.0
    %881 = vmatprep.subr.mxu0 0.0
    %882 = vmatpush1.msra.mxu0 0.0
    %883 = vmatprep.subr.mxu0 0.0
    %884 = vmatpush1.msra.mxu0 0.0
    %885 = vmatprep.subr.mxu0 0.0
    %886 = vmatpush1.msra.mxu0 0.0
    %887 = vmatprep.subr.mxu0 0.0
    %888 = vmatpush1.msra.mxu0 0.0
    %889 = vmatprep.subr.mxu0 0.0
    %890 = vmatpush1.msra.mxu0 0.0
    %891 = vmatprep.subr.mxu0 0.0
    %892 = vmatpush1.msra.mxu0 0.0
    %893 = vmatprep.subr.mxu0 0.0
    %894 = vmatpush1.msra.mxu0 0.0
    %895 = vmatprep.subr.mxu0 0.0
    %896 = vmatpush1.msra.mxu0 0.0
    %897 = vmatprep.subr.mxu0 0.0
    %898 = vmatpush1.msra.mxu0 0.0
    %899 = vmatprep.subr.mxu0 0.0
    %900 = vmatpush1.msra.mxu0 0.0
    %901 = vmatprep.subr.mxu0 0.0
    %902 = vmatpush1.msra.mxu0 0.0
    %903 = vmatprep.subr.mxu0 0.0
    %904 = vmatpush1.msra.mxu0 0.0
    %905 = vmatprep.subr.mxu0 0.0
    %906 = vmatpush1.msra.mxu0 0.0
    %907 = vmatprep.subr.mxu0 0.0
    %908 = vmatpush1.msra.mxu0 0.0
    %909 = vmatprep.subr.mxu0 0.0
    %910 = vmatpush1.msra.mxu0 0.0
    %911 = vmatprep.subr.mxu0 0.0
    %912 = vmatpush1.msra.mxu0 0.0
    %913 = vmatprep.subr.mxu0 0.0
    %914 = vmatpush1.msra.mxu0 0.0
    %915 = vmatprep.subr.mxu0 0.0
    %916 = vmatpush1.msra.mxu0 0.0
    %917 = vmatprep.subr.mxu0 0.0
    %918 = vmatpush1.msra.mxu0 0.0
    %919 = vmatprep.subr.mxu0 0.0
    %920 = vmatpush1.msra.mxu0 0.0
    %921 = vmatprep.subr.mxu0 0.0
    %922 = vmatpush1.msra.mxu0 0.0
    %923 = vmatprep.subr.mxu0 0.0
    %924 = vmatpush1.msra.mxu0 0.0
    %925 = vmatprep.subr.mxu0 0.0
    %926 = vmatpush1.msra.mxu0 0.0
    %927 = vmatprep.subr.mxu0 0.0
    %928 = vmatpush1.msra.mxu0 0.0
    %929 = vmatprep.mubr.f32.mxu0 0.0
    %930 = vmatmul.mubr.f32.gmra.mrb[0].mxu0 %v863
    %v931 = vpop.f32.mrb[0].mxu0
    %v932 = vadd.f32 0.0, %v931
    %v933 = vpop.f32.mrb[0].mxu0
    %934 = vdwg.mxu0
    %v935 = vrcp.pop %v857
    %v936 = vmul.f32 %v932, %v935
    %937 = vset.pattern.permute.xlu0 2
    %938 = vperm.xlu0 %937, %v230
    %v939 = vpop.permute.xlu0 %938
    %v941 = vlaneseq
    %v942 = vshrl.u32 %v941, 7
    %v943 = vsub.s32 6, %v942
    %v944 = vrot.slane %v724, %v943
    %v945 = vadd.f32 %v939, %v944
    %vm946 = vcmp.gt.f32.partialorder %v945, 0.0
    %v947 = vmul.f32 %v945, 0.2
    %v948 = vsel %vm946, %v945, %v947
    %v949 = vsel %vm278, %v948, -inf
    %950 = vmax.xlane.f32.xlu0 %v949
    %v951 = vpop.xlane.xlu0 %950
    %v952 = vsub.f32 %v948, %v951
    %v953 = vmul.f32 %v952, 1.442695
    %v954 = vpow.pop %v953
    %v955 = vsel %vm278, %v954, 0.0
    %956 = vadd.xlane.f32.xlu0 %v955
    %v957 = vpop.xlane.xlu0 %956
    %958 = vrot.lane.b32.xlu0 %v120, 112
    %v959 = vpop.permute.xlu0 %958
    %v962 = vsel %vm278, %v954, 0
    %964 = vmatprep.subr.mxu0 0.0
    %965 = vmatpush1.msra.mxu0 %v959
    %966 = vmatprep.subr.mxu0 0.0
    %967 = vmatpush1.msra.mxu0 0.0
    %968 = vmatprep.subr.mxu0 0.0
    %969 = vmatpush1.msra.mxu0 0.0
    %970 = vmatprep.subr.mxu0 0.0
    %971 = vmatpush1.msra.mxu0 0.0
    %972 = vmatprep.subr.mxu0 0.0
    %973 = vmatpush1.msra.mxu0 0.0
    %974 = vmatprep.subr.mxu0 0.0
    %975 = vmatpush1.msra.mxu0 0.0
    %976 = vmatprep.subr.mxu0 0.0
    %977 = vmatpush1.msra.mxu0 0.0
    %978 = vmatprep.subr.mxu0 0.0
    %979 = vmatpush1.msra.mxu0 0.0
    %980 = vmatprep.subr.mxu0 0.0
    %981 = vmatpush1.msra.mxu0 0.0
    %982 = vmatprep.subr.mxu0 0.0
    %983 = vmatpush1.msra.mxu0 0.0
    %984 = vmatprep.subr.mxu0 0.0
    %985 = vmatpush1.msra.mxu0 0.0
    %986 = vmatprep.subr.mxu0 0.0
    %987 = vmatpush1.msra.mxu0 0.0
    %988 = vmatprep.subr.mxu0 0.0
    %989 = vmatpush1.msra.mxu0 0.0
    %990 = vmatprep.subr.mxu0 0.0
    %991 = vmatpush1.msra.mxu0 0.0
    %992 = vmatprep.subr.mxu0 0.0
    %993 = vmatpush1.msra.mxu0 0.0
    %994 = vmatprep.subr.mxu0 0.0
    %995 = vmatpush1.msra.mxu0 0.0
    %996 = vmatprep.subr.mxu0 0.0
    %997 = vmatpush1.msra.mxu0 0.0
    %998 = vmatprep.subr.mxu0 0.0
    %999 = vmatpush1.msra.mxu0 0.0
    %1000 = vmatprep.subr.mxu0 0.0
    %1001 = vmatpush1.msra.mxu0 0.0
    %1002 = vmatprep.subr.mxu0 0.0
    %1003 = vmatpush1.msra.mxu0 0.0
    %1004 = vmatprep.subr.mxu0 0.0
    %1005 = vmatpush1.msra.mxu0 0.0
    %1006 = vmatprep.subr.mxu0 0.0
    %1007 = vmatpush1.msra.mxu0 0.0
    %1008 = vmatprep.subr.mxu0 0.0
    %1009 = vmatpush1.msra.mxu0 0.0
    %1010 = vmatprep.subr.mxu0 0.0
    %1011 = vmatpush1.msra.mxu0 0.0
    %1012 = vmatprep.subr.mxu0 0.0
    %1013 = vmatpush1.msra.mxu0 0.0
    %1014 = vmatprep.subr.mxu0 0.0
    %1015 = vmatpush1.msra.mxu0 0.0
    %1016 = vmatprep.subr.mxu0 0.0
    %1017 = vmatpush1.msra.mxu0 0.0
    %1018 = vmatprep.subr.mxu0 0.0
    %1019 = vmatpush1.msra.mxu0 0.0
    %1020 = vmatprep.subr.mxu0 0.0
    %1021 = vmatpush1.msra.mxu0 0.0
    %1022 = vmatprep.subr.mxu0 0.0
    %1023 = vmatpush1.msra.mxu0 0.0
    %1024 = vmatprep.subr.mxu0 0.0
    %1025 = vmatpush1.msra.mxu0 0.0
    %1026 = vmatprep.subr.mxu0 0.0
    %1027 = vmatpush1.msra.mxu0 0.0
    %1028 = vmatprep.mubr.f32.mxu0 0.0
    %1029 = vmatmul.mubr.f32.gmra.mrb[0].mxu0 %v962
    %v1030 = vpop.f32.mrb[0].mxu0
    %v1031 = vadd.f32 0.0, %v1030
    %v1032 = vpop.f32.mrb[0].mxu0
    %1033 = vdwg.mxu0
    %v1034 = vrcp.pop %v957
    %v1035 = vmul.f32 %v1031, %v1034
    %1036 = vset.pattern.permute.xlu0 3
    %1037 = vperm.xlu0 %1036, %v230
    %v1038 = vpop.permute.xlu0 %1037
    %v1040 = vlaneseq
    %v1041 = vshrl.u32 %v1040, 7
    %v1042 = vsub.s32 7, %v1041
    %v1043 = vrot.slane %v724, %v1042
    %v1044 = vadd.f32 %v1038, %v1043
    %vm1045 = vcmp.gt.f32.partialorder %v1044, 0.0
    %v1046 = vmul.f32 %v1044, 0.2
    %v1047 = vsel %vm1045, %v1044, %v1046
    %v1048 = vsel %vm278, %v1047, -inf
    %1049 = vmax.xlane.f32.xlu0 %v1048
    %v1050 = vpop.xlane.xlu0 %1049
    %v1051 = vsub.f32 %v1047, %v1050
    %v1052 = vmul.f32 %v1051, 1.442695
    %v1053 = vpow.pop %v1052
    %v1054 = vsel %vm278, %v1053, 0.0
    %1055 = vadd.xlane.f32.xlu0 %v1054
    %v1056 = vpop.xlane.xlu0 %1055
    %1057 = vrot.lane.b32.xlu0 %v120, 104
    %v1058 = vpop.permute.xlu0 %1057
    %v1061 = vsel %vm278, %v1053, 0
    %1063 = vmatprep.subr.mxu0 0.0
    %1064 = vmatpush1.msra.mxu0 %v1058
    %1065 = vmatprep.subr.mxu0 0.0
    %1066 = vmatpush1.msra.mxu0 0.0
    %1067 = vmatprep.subr.mxu0 0.0
    %1068 = vmatpush1.msra.mxu0 0.0
    %1069 = vmatprep.subr.mxu0 0.0
    %1070 = vmatpush1.msra.mxu0 0.0
    %1071 = vmatprep.subr.mxu0 0.0
    %1072 = vmatpush1.msra.mxu0 0.0
    %1073 = vmatprep.subr.mxu0 0.0
    %1074 = vmatpush1.msra.mxu0 0.0
    %1075 = vmatprep.subr.mxu0 0.0
    %1076 = vmatpush1.msra.mxu0 0.0
    %1077 = vmatprep.subr.mxu0 0.0
    %1078 = vmatpush1.msra.mxu0 0.0
    %1079 = vmatprep.subr.mxu0 0.0
    %1080 = vmatpush1.msra.mxu0 0.0
    %1081 = vmatprep.subr.mxu0 0.0
    %1082 = vmatpush1.msra.mxu0 0.0
    %1083 = vmatprep.subr.mxu0 0.0
    %1084 = vmatpush1.msra.mxu0 0.0
    %1085 = vmatprep.subr.mxu0 0.0
    %1086 = vmatpush1.msra.mxu0 0.0
    %1087 = vmatprep.subr.mxu0 0.0
    %1088 = vmatpush1.msra.mxu0 0.0
    %1089 = vmatprep.subr.mxu0 0.0
    %1090 = vmatpush1.msra.mxu0 0.0
    %1091 = vmatprep.subr.mxu0 0.0
    %1092 = vmatpush1.msra.mxu0 0.0
    %1093 = vmatprep.subr.mxu0 0.0
    %1094 = vmatpush1.msra.mxu0 0.0
    %1095 = vmatprep.subr.mxu0 0.0
    %1096 = vmatpush1.msra.mxu0 0.0
    %1097 = vmatprep.subr.mxu0 0.0
    %1098 = vmatpush1.msra.mxu0 0.0
    %1099 = vmatprep.subr.mxu0 0.0
    %1100 = vmatpush1.msra.mxu0 0.0
    %1101 = vmatprep.subr.mxu0 0.0
    %1102 = vmatpush1.msra.mxu0 0.0
    %1103 = vmatprep.subr.mxu0 0.0
    %1104 = vmatpush1.msra.mxu0 0.0
    %1105 = vmatprep.subr.mxu0 0.0
    %1106 = vmatpush1.msra.mxu0 0.0
    %1107 = vmatprep.subr.mxu0 0.0
    %1108 = vmatpush1.msra.mxu0 0.0
    %1109 = vmatprep.subr.mxu0 0.0
    %1110 = vmatpush1.msra.mxu0 0.0
    %1111 = vmatprep.subr.mxu0 0.0
    %1112 = vmatpush1.msra.mxu0 0.0
    %1113 = vmatprep.subr.mxu0 0.0
    %1114 = vmatpush1.msra.mxu0 0.0
    %1115 = vmatprep.subr.mxu0 0.0
    %1116 = vmatpush1.msra.mxu0 0.0
    %1117 = vmatprep.subr.mxu0 0.0
    %1118 = vmatpush1.msra.mxu0 0.0
    %1119 = vmatprep.subr.mxu0 0.0
    %1120 = vmatpush1.msra.mxu0 0.0
    %1121 = vmatprep.subr.mxu0 0.0
    %1122 = vmatpush1.msra.mxu0 0.0
    %1123 = vmatprep.subr.mxu0 0.0
    %1124 = vmatpush1.msra.mxu0 0.0
    %1125 = vmatprep.subr.mxu0 0.0
    %1126 = vmatpush1.msra.mxu0 0.0
    %1127 = vmatprep.mubr.f32.mxu0 0.0
    %1128 = vmatmul.mubr.f32.gmra.mrb[0].mxu0 %v1061
    %v1129 = vpop.f32.mrb[0].mxu0
    %v1130 = vadd.f32 0.0, %v1129
    %v1131 = vpop.f32.mrb[0].mxu0
    %1132 = vdwg.mxu0
    %v1133 = vrcp.pop %v1056
    %v1134 = vmul.f32 %v1130, %v1133
    %1136 = vrot.lane.b32.xlu0 %v936, 8
    %v1137 = vpop.permute.xlu0 %1136
    %1140 = vrot.lane.b32.xlu0 %v1035, 16
    %v1141 = vpop.permute.xlu0 %1140
    %1144 = vrot.lane.b32.xlu0 %v1134, 24
    %v1145 = vpop.permute.xlu0 %1144
    %v1147 = vsel %vm278, %v836, %v1137
    %v1148 = vsel %vm674, %v1147, %v1141
    %v1149 = vsel %vm676, %v1148, %v1145
    %v1150 = vld [vmem:[%s3] sm:$0x1]
    %v1152 = vlaneseq
    %v1153 = vshrl.u32 %v1152, 7
    %v1154 = vsub.s32 0, %v1153
    %v1155 = vrot.slane %v1150, %v1154
    %v1157 = vadd.f32 %v1149, %v1155
    %vm1158 = vcmp.gt.f32.partialorder %v1157, 0.0
    %v1159 = vmin.f32 %v1157, 0.0
    %v1160 = vmul.f32 %v1159, 1.442695
    %v1161 = vpow.pop %v1160
    %v1162 = vsub.f32 %v1161, 1.0
    %v1163 = vsel %vm1158, %v1157, %v1162
    %1165 = vrot.lane.b32.xlu0 %v1163, 32
    %v1166 = vpop.permute.xlu0 %1165
    %v1168 = vmul.f32 %v145, %v1166
    %v1169 = vsub.f32 1.0, %v145
    %1170 = vrot.lane.b32.xlu0 %v36, 32
    %v1171 = vpop.permute.xlu0 %1170
    %v1173 = vmul.f32 %v1169, %v1171
    %v1174 = vadd.f32 %v1168, %v1173
    %1176 = vrot.lane.b32.xlu0 %v1174, 96
    %v1177 = vpop.permute.xlu0 %1176
    %s1179 = scalar_lea.vmem [#allocation5], 8
    %1180 = vst.msk [vmem:[%s1179] sm:$0xff] %vm41, %v1177
    // Predicated region
    $region26: #{tpu_custom_call.1} parent=1 // pred_check
      _
    $region27: #{tpu_custom_call.1} parent=1 // pred_check_branch
      %1182 = sbr.rel (0) target = $region29
    $region28: #{tpu_custom_call.1} parent=1 // pred_region
      %s1184 = ssub.s32 256, 256
      %1185 = vsyncadd [#allocation4], %s1184
      %s1186 = sshll.u32 [#allocation5], 4
      %s1187 = int_to_ptr.vmem [resolvable:$true] %s1186
      %1192 = dma.vmem_to_hbm [thread:$0]  %s1187, 256, %s5, [#allocation4], 128, 128, 8
    $region29: #{tpu_custom_call.1} parent=1 // pred_fallthru
      _
    // Predicated region
    $region30: #{tpu_custom_call.1} parent=1 // pred_check
      _
    $region31: #{tpu_custom_call.1} parent=1 // pred_check_branch
      %1194 = sbr.rel (0) target = $region33
    $region32: #{tpu_custom_call.1} parent=1 // pred_region
      %1195 = dma.done [#allocation4], 256
    $region33: #{tpu_custom_call.1} parent=1 // pred_fallthru
      _
    %1196 = vsyncpa [#allocation3], 1
    %1197 = vsyncpa [#allocation4], 1

</llo_original>
